<compile_context>
chip_gen: v6e
topology: v6e:2x2x1
jax: 0.10.0
libtpu: 0.0.40
codegen_flags: <defaults>
</compile_context>

<pallas_src>
import functools

import jax
import jax.numpy as jnp
from jax.experimental import pallas as pl
from jax.experimental.pallas import tpu as pltpu


_BN_EPS = 1e-5
_LANE = 128
_DEPTH_TO_OUT_SIZE = {4: 2, 5: 1, 3: 5}


def _round_up(x: int, m: int) -> int:
    return (x + m - 1) // m * m


def _pad2(a, rows, cols, dtype):
    out = jnp.zeros((rows, cols), dtype)
    return out.at[: a.shape[0], : a.shape[1]].set(a.astype(dtype))


# --------------------------------------------------------------------------
# Parameter preparation (done ONCE): fold fixed-BN affine, pad, cast to bf16.
# --------------------------------------------------------------------------
def prepare_params(params, *, compute_dtype=jnp.bfloat16):
    enc = params["enc"]
    depth = len(enc)
    assert depth in _DEPTH_TO_OUT_SIZE, depth
    assert enc[0]["w"].shape[1] == 1, "first conv must have in_channels == 1"

    ops = []
    inv = 1.0 / jnp.sqrt(jnp.float32(1.0 + _BN_EPS))

    # layer 1 (Cin == 1): input is host-im2col'd to pairs, so a single matmul
    p = enc[0]
    scale = p["gamma"] * inv
    w = p["w"] * scale[:, None, None]                      # (C1, 1, 2)
    b = p["b"] * scale + p["beta"]
    c1 = w.shape[0]
    ops.append(_pad2(w[:, 0, :].T, _LANE, _round_up(c1, _LANE), compute_dtype))
    ops.append(_pad2(b[None, :], 1, _round_up(c1, _LANE), jnp.float32))

    # conv layers 2..depth: y[t] = x[t] @ W0 + x[t+s] @ W1 + b
    for p in enc[1:]:
        scale = p["gamma"] * inv
        w = p["w"] * scale[:, None, None]                  # (Co, Ci, 2)
        b = p["b"] * scale + p["beta"]
        co, ci, _ = w.shape
        cip, cop = _round_up(ci, _LANE), _round_up(co, _LANE)
        ops.append(_pad2(w[:, :, 0].T, cip, cop, compute_dtype))
        ops.append(_pad2(w[:, :, 1].T, cip, cop, compute_dtype))
        ops.append(_pad2(b[None, :], 1, cop, jnp.float32))

    # head: flat[b, c*L_out + l] = conv_out[b, c, l]  ->  Wh_l = W[:, l::L_out].T
    hw, hb = params["head"]["w"], params["head"]["b"]      # (out, C*L_out), (out,)
    out_ch = hw.shape[0]
    c_last = enc[-1]["w"].shape[0]
    l_out = _DEPTH_TO_OUT_SIZE[depth]
    cip, cop = _round_up(c_last, _LANE), _round_up(out_ch, _LANE)
    for l in range(l_out):
        ops.append(_pad2(hw[:, l::l_out].T, cip, cop, compute_dtype))
    ops.append(_pad2(hb[None, :], 1, cop, jnp.float32))
    return tuple(ops)


# --------------------------------------------------------------------------
# The fused kernel: 4 conv blocks + head, all activations resident on-chip.
# --------------------------------------------------------------------------
def _make_forward_kernel(batch, depth, l_out, compute_dtype):
    shifts = [1 << (j - 1) for j in range(1, depth)]          # conv layers 2..d
    head_rows = [l * (1 << (depth - 1)) for l in range(l_out)]

    def kernel(*refs):
        x_ref, o_ref = refs[0], refs[-1]
        wrefs = refs[1:-1]

        # hoist all weight loads out of the batch loop
        w1_v = wrefs[0][...]
        b1_v = wrefs[1][...]
        conv_v = []
        idx = 2
        for _ in range(depth - 1):
            conv_v.append((wrefs[idx][...], wrefs[idx + 1][...],
                           wrefs[idx + 2][...]))
            idx += 3
        head_w_v = [wrefs[idx + l][...] for l in range(l_out)]
        head_b_v = wrefs[idx + l_out][...]

        for b in range(batch):                                # static loop
            # layer 1: rows already hold [x[2t], x[2t+1]] in lanes 0..1
            a = x_ref[b, :, :].astype(compute_dtype)          # (rows0, 128)
            a = jnp.maximum(
                jnp.dot(a, w1_v, preferred_element_type=jnp.float32) + b1_v,
                0.0)

            # conv layers 2..depth: two matmuls on row-shifted views
            for s, (w0, w1, bias) in zip(shifts, conv_v):
                r = a.shape[0] - s
                y = jnp.dot(a[:r, :].astype(compute_dtype), w0,
                            preferred_element_type=jnp.float32)
                y = y + jnp.dot(a[s:, :].astype(compute_dtype), w1,
                                preferred_element_type=jnp.float32)
                a = jnp.maximum(y + bias, 0.0)

            # head: logits = sum_l a[row_l] @ Wh_l + b   (no activation)
            logits = head_b_v
            for row, wh in zip(head_rows, head_w_v):
                logits = logits + jnp.dot(
                    a[row:row + 1, :].astype(compute_dtype), wh,
                    preferred_element_type=jnp.float32)
            o_ref[pl.ds(b, 1), :] = logits

    return kernel


# --------------------------------------------------------------------------
# Forward wrapper (one pallas_call; minimal host-side glue)
# --------------------------------------------------------------------------
def mnist1d_convnet_forward(x, prepared, *, hidden=(32, 64, 128, 256),
                            out_channels=10, compute_dtype=jnp.bfloat16):
    """x: (B, L) or (B, 1, L); prepared: output of prepare_params()."""
    if x.ndim == 3:
        x = x[:, 0, :]
    B, L = x.shape
    depth = len(hidden)
    l_out = _DEPTH_TO_OUT_SIZE[depth]

    t1 = (L - 2) // 2 + 1                                     # conv1 out length
    rows0 = _round_up(max(t1, l_out * (1 << (depth - 1))), 8)

    # im2col only for the (single-channel) input: (B, t1, 2) pairs, pad lanes
    xin = jnp.pad(x[:, : 2 * t1].astype(jnp.float32).reshape(B, t1, 2),
                  ((0, 0), (0, rows0 - t1), (0, _LANE - 2)))

    out_pad = _round_up(out_channels, _LANE)
    kernel = _make_forward_kernel(B, depth, l_out, compute_dtype)
    vmem = pl.BlockSpec(memory_space=pltpu.MemorySpace.VMEM)

    out = pl.pallas_call(
        kernel,
        out_shape=jax.ShapeDtypeStruct((B, out_pad), jnp.float32),
        in_specs=[vmem] * (1 + len(prepared)),
        out_specs=vmem,
    )(xin, *prepared)
    return out[:, :out_channels]


# --------------------------------------------------------------------------
# Torch-layout parameter init + plain-JAX reference (for self-check only)
# --------------------------------------------------------------------------
def init_params(key, out_channels=10, hidden=(32, 64, 128, 256)):
    channels = [1] + list(hidden)
    params = {"enc": [], "head": {}}
    for ci, co in zip(channels[:-1], channels[1:]):
        key, kw, kb = jax.random.split(key, 3)
        bound = 1.0 / (ci * 2) ** 0.5
        params["enc"].append({
            "w": jax.random.uniform(kw, (co, ci, 2), jnp.float32, -bound, bound),
            "b": jax.random.uniform(kb, (co,), jnp.float32, -bound, bound),
            "gamma": jnp.ones((co,), jnp.float32),
            "beta": jnp.zeros((co,), jnp.float32),
        })
    head_in = channels[-1] * _DEPTH_TO_OUT_SIZE[len(hidden)]
    key, kw, kb = jax.random.split(key, 3)
    bound = 1.0 / head_in ** 0.5
    params["head"] = {
        "w": jax.random.uniform(kw, (out_channels, head_in), jnp.float32,
                                -bound, bound),
        "b": jax.random.uniform(kb, (out_channels,), jnp.float32, -bound, bound),
    }
    return params


def _reference_forward(x, params):
    a = x[:, None, :] if x.ndim == 2 else x                   # (B, 1, L), NCL
    den = jnp.sqrt(jnp.float32(1.0 + _BN_EPS))
    for p in params["enc"]:
        _, _, lc = a.shape
        t = (lc - 2) // 2 + 1
        xa, xb = a[:, :, 0:2 * t:2], a[:, :, 1:2 * t:2]
        y = (jnp.einsum("bct,oc->bot", xa, p["w"][:, :, 0]) +
             jnp.einsum("bct,oc->bot", xb, p["w"][:, :, 1]) +
             p["b"][None, :, None])
        y = (y / den) * p["gamma"][None, :, None] + p["beta"][None, :, None]
        a = jnp.maximum(y, 0.0)
    bsz, c, lf = a.shape
    flat = a.reshape(bsz, c * lf)                              # torch Flatten
    return flat @ params["head"]["w"].T + params["head"]["b"][None, :]


if __name__ == "__main__":
    key = jax.random.PRNGKey(0)
    kp, kx = jax.random.split(key)

    # MNIST-1D: sequence length 40 -> 20 -> 10 -> 5 -> 2 after 4 stride-2 convs
    B, L, OUT = 2, 40, 10
    HIDDEN = (32, 64, 128, 256)

    params = init_params(kp, out_channels=OUT, hidden=HIDDEN)
    prepared = prepare_params(params)          # BN-fold + pad + bf16, ONCE
    x = jax.random.normal(kx, (B, L), jnp.float32)

    fwd = jax.jit(functools.partial(mnist1d_convnet_forward,
                                    hidden=HIDDEN, out_channels=OUT))
    y = jax.block_until_ready(fwd(x, prepared))

    assert y.shape == (B, OUT), y.shape
    assert bool(jnp.all(jnp.isfinite(y)))

    # loose-tolerance check vs plain-JAX f32 reference (kernel uses bf16 MXU)
    y_ref = _reference_forward(x, params)
    err = float(jnp.max(jnp.abs(y - y_ref)))
    assert err < 1e-1, f"max abs error vs reference: {err}"

    print("KERNEL_OK")
</pallas_src>

<mosaic_0001>
module attributes {stable_mosaic.version = 11 : i64} {
  func.func @kernel(%arg0: memref<2x24x128xf32, #tpu.memory_space<vmem>>, %arg1: memref<128x128xbf16, #tpu.memory_space<vmem>>, %arg2: memref<1x128xf32, #tpu.memory_space<vmem>>, %arg3: memref<128x128xbf16, #tpu.memory_space<vmem>>, %arg4: memref<128x128xbf16, #tpu.memory_space<vmem>>, %arg5: memref<1x128xf32, #tpu.memory_space<vmem>>, %arg6: memref<128x128xbf16, #tpu.memory_space<vmem>>, %arg7: memref<128x128xbf16, #tpu.memory_space<vmem>>, %arg8: memref<1x128xf32, #tpu.memory_space<vmem>>, %arg9: memref<128x256xbf16, #tpu.memory_space<vmem>>, %arg10: memref<128x256xbf16, #tpu.memory_space<vmem>>, %arg11: memref<1x256xf32, #tpu.memory_space<vmem>>, %arg12: memref<256x128xbf16, #tpu.memory_space<vmem>>, %arg13: memref<256x128xbf16, #tpu.memory_space<vmem>>, %arg14: memref<1x128xf32, #tpu.memory_space<vmem>>, %arg15: memref<2x128xf32, #tpu.memory_space<vmem>>) attributes {dimension_semantics = [], scalar_prefetch = 0 : i64, scratch_operands = 0 : i64, tpu.core_type = #tpu.core_type<tc>} {
    %c0 = arith.constant 0 : index
    %c0_0 = arith.constant 0 : index
    %0 = vector.load %arg1[%c0, %c0_0] : memref<128x128xbf16, #tpu.memory_space<vmem>>, vector<128x128xbf16>
    %c0_1 = arith.constant 0 : index
    %c0_2 = arith.constant 0 : index
    %1 = vector.load %arg2[%c0_1, %c0_2] : memref<1x128xf32, #tpu.memory_space<vmem>>, vector<1x128xf32>
    %c0_3 = arith.constant 0 : index
    %c0_4 = arith.constant 0 : index
    %2 = vector.load %arg3[%c0_3, %c0_4] : memref<128x128xbf16, #tpu.memory_space<vmem>>, vector<128x128xbf16>
    %c0_5 = arith.constant 0 : index
    %c0_6 = arith.constant 0 : index
    %3 = vector.load %arg4[%c0_5, %c0_6] : memref<128x128xbf16, #tpu.memory_space<vmem>>, vector<128x128xbf16>
    %c0_7 = arith.constant 0 : index
    %c0_8 = arith.constant 0 : index
    %4 = vector.load %arg5[%c0_7, %c0_8] : memref<1x128xf32, #tpu.memory_space<vmem>>, vector<1x128xf32>
    %c0_9 = arith.constant 0 : index
    %c0_10 = arith.constant 0 : index
    %5 = vector.load %arg6[%c0_9, %c0_10] : memref<128x128xbf16, #tpu.memory_space<vmem>>, vector<128x128xbf16>
    %c0_11 = arith.constant 0 : index
    %c0_12 = arith.constant 0 : index
    %6 = vector.load %arg7[%c0_11, %c0_12] : memref<128x128xbf16, #tpu.memory_space<vmem>>, vector<128x128xbf16>
    %c0_13 = arith.constant 0 : index
    %c0_14 = arith.constant 0 : index
    %7 = vector.load %arg8[%c0_13, %c0_14] : memref<1x128xf32, #tpu.memory_space<vmem>>, vector<1x128xf32>
    %c0_15 = arith.constant 0 : index
    %c0_16 = arith.constant 0 : index
    %8 = vector.load %arg9[%c0_15, %c0_16] : memref<128x256xbf16, #tpu.memory_space<vmem>>, vector<128x256xbf16>
    %c0_17 = arith.constant 0 : index
    %c0_18 = arith.constant 0 : index
    %9 = vector.load %arg10[%c0_17, %c0_18] : memref<128x256xbf16, #tpu.memory_space<vmem>>, vector<128x256xbf16>
    %c0_19 = arith.constant 0 : index
    %c0_20 = arith.constant 0 : index
    %10 = vector.load %arg11[%c0_19, %c0_20] : memref<1x256xf32, #tpu.memory_space<vmem>>, vector<1x256xf32>
    %c0_21 = arith.constant 0 : index
    %c0_22 = arith.constant 0 : index
    %11 = vector.load %arg12[%c0_21, %c0_22] : memref<256x128xbf16, #tpu.memory_space<vmem>>, vector<256x128xbf16>
    %c0_23 = arith.constant 0 : index
    %c0_24 = arith.constant 0 : index
    %12 = vector.load %arg13[%c0_23, %c0_24] : memref<256x128xbf16, #tpu.memory_space<vmem>>, vector<256x128xbf16>
    %c0_25 = arith.constant 0 : index
    %c0_26 = arith.constant 0 : index
    %13 = vector.load %arg14[%c0_25, %c0_26] : memref<1x128xf32, #tpu.memory_space<vmem>>, vector<1x128xf32>
    %c0_27 = arith.constant 0 : index
    %c0_28 = arith.constant 0 : index
    %c0_29 = arith.constant 0 : index
    %14 = vector.load %arg0[%c0_27, %c0_28, %c0_29] : memref<2x24x128xf32, #tpu.memory_space<vmem>>, vector<1x24x128xf32>
    %15 = vector.shape_cast %14 : vector<1x24x128xf32> to vector<24x128xf32>
    %16 = arith.truncf %15 : vector<24x128xf32> to vector<24x128xbf16>
    %cst = arith.constant dense<0.000000e+00> : vector<24x128xf32>
    %17 = tpu.matmul %16, %0, %cst {dimension_numbers = #tpu.dot_dimension_numbers<[1], [0], [0], [1], [0, 0, 1, 1], [], []>} : vector<24x128xbf16>, vector<128x128xbf16>, vector<24x128xf32> -> vector<24x128xf32>
    %18 = vector.broadcast %1 : vector<1x128xf32> to vector<24x128xf32>
    %19 = arith.addf %17, %18 : vector<24x128xf32>
    %cst_30 = arith.constant 0.000000e+00 : f32
    %20 = vector.broadcast %cst_30 : f32 to vector<24x128xf32>
    %21 = arith.maximumf %19, %20 : vector<24x128xf32>
    %22 = vector.extract_strided_slice %21 {offsets = [0, 0], sizes = [23, 128], strides = [1, 1]} : vector<24x128xf32> to vector<23x128xf32>
    %23 = arith.truncf %22 : vector<23x128xf32> to vector<23x128xbf16>
    %cst_31 = arith.constant dense<0.000000e+00> : vector<23x128xf32>
    %24 = tpu.matmul %23, %2, %cst_31 {dimension_numbers = #tpu.dot_dimension_numbers<[1], [0], [0], [1], [0, 0, 1, 1], [], []>} : vector<23x128xbf16>, vector<128x128xbf16>, vector<23x128xf32> -> vector<23x128xf32>
    %25 = vector.extract_strided_slice %21 {offsets = [1, 0], sizes = [23, 128], strides = [1, 1]} : vector<24x128xf32> to vector<23x128xf32>
    %26 = arith.truncf %25 : vector<23x128xf32> to vector<23x128xbf16>
    %cst_32 = arith.constant dense<0.000000e+00> : vector<23x128xf32>
    %27 = tpu.matmul %26, %3, %cst_32 {dimension_numbers = #tpu.dot_dimension_numbers<[1], [0], [0], [1], [0, 0, 1, 1], [], []>} : vector<23x128xbf16>, vector<128x128xbf16>, vector<23x128xf32> -> vector<23x128xf32>
    %28 = arith.addf %24, %27 : vector<23x128xf32>
    %29 = vector.broadcast %4 : vector<1x128xf32> to vector<23x128xf32>
    %30 = arith.addf %28, %29 : vector<23x128xf32>
    %cst_33 = arith.constant 0.000000e+00 : f32
    %31 = vector.broadcast %cst_33 : f32 to vector<23x128xf32>
    %32 = arith.maximumf %30, %31 : vector<23x128xf32>
    %33 = vector.extract_strided_slice %32 {offsets = [0, 0], sizes = [21, 128], strides = [1, 1]} : vector<23x128xf32> to vector<21x128xf32>
    %34 = arith.truncf %33 : vector<21x128xf32> to vector<21x128xbf16>
    %cst_34 = arith.constant dense<0.000000e+00> : vector<21x128xf32>
    %35 = tpu.matmul %34, %5, %cst_34 {dimension_numbers = #tpu.dot_dimension_numbers<[1], [0], [0], [1], [0, 0, 1, 1], [], []>} : vector<21x128xbf16>, vector<128x128xbf16>, vector<21x128xf32> -> vector<21x128xf32>
    %36 = vector.extract_strided_slice %32 {offsets = [2, 0], sizes = [21, 128], strides = [1, 1]} : vector<23x128xf32> to vector<21x128xf32>
    %37 = arith.truncf %36 : vector<21x128xf32> to vector<21x128xbf16>
    %cst_35 = arith.constant dense<0.000000e+00> : vector<21x128xf32>
    %38 = tpu.matmul %37, %6, %cst_35 {dimension_numbers = #tpu.dot_dimension_numbers<[1], [0], [0], [1], [0, 0, 1, 1], [], []>} : vector<21x128xbf16>, vector<128x128xbf16>, vector<21x128xf32> -> vector<21x128xf32>
    %39 = arith.addf %35, %38 : vector<21x128xf32>
    %40 = vector.broadcast %7 : vector<1x128xf32> to vector<21x128xf32>
    %41 = arith.addf %39, %40 : vector<21x128xf32>
    %cst_36 = arith.constant 0.000000e+00 : f32
    %42 = vector.broadcast %cst_36 : f32 to vector<21x128xf32>
    %43 = arith.maximumf %41, %42 : vector<21x128xf32>
    %44 = vector.extract_strided_slice %43 {offsets = [0, 0], sizes = [17, 128], strides = [1, 1]} : vector<21x128xf32> to vector<17x128xf32>
    %45 = arith.truncf %44 : vector<17x128xf32> to vector<17x128xbf16>
    %cst_37 = arith.constant dense<0.000000e+00> : vector<17x256xf32>
    %46 = tpu.matmul %45, %8, %cst_37 {dimension_numbers = #tpu.dot_dimension_numbers<[1], [0], [0], [1], [0, 0, 1, 1], [], []>} : vector<17x128xbf16>, vector<128x256xbf16>, vector<17x256xf32> -> vector<17x256xf32>
    %47 = vector.extract_strided_slice %43 {offsets = [4, 0], sizes = [17, 128], strides = [1, 1]} : vector<21x128xf32> to vector<17x128xf32>
    %48 = arith.truncf %47 : vector<17x128xf32> to vector<17x128xbf16>
    %cst_38 = arith.constant dense<0.000000e+00> : vector<17x256xf32>
    %49 = tpu.matmul %48, %9, %cst_38 {dimension_numbers = #tpu.dot_dimension_numbers<[1], [0], [0], [1], [0, 0, 1, 1], [], []>} : vector<17x128xbf16>, vector<128x256xbf16>, vector<17x256xf32> -> vector<17x256xf32>
    %50 = arith.addf %46, %49 : vector<17x256xf32>
    %51 = vector.broadcast %10 : vector<1x256xf32> to vector<17x256xf32>
    %52 = arith.addf %50, %51 : vector<17x256xf32>
    %cst_39 = arith.constant 0.000000e+00 : f32
    %53 = vector.broadcast %cst_39 : f32 to vector<17x256xf32>
    %54 = arith.maximumf %52, %53 : vector<17x256xf32>
    %55 = vector.extract_strided_slice %54 {offsets = [0, 0], sizes = [1, 256], strides = [1, 1]} : vector<17x256xf32> to vector<1x256xf32>
    %56 = arith.truncf %55 : vector<1x256xf32> to vector<1x256xbf16>
    %cst_40 = arith.constant dense<0.000000e+00> : vector<1x128xf32>
    %57 = tpu.matmul %56, %11, %cst_40 {dimension_numbers = #tpu.dot_dimension_numbers<[1], [0], [0], [1], [0, 0, 1, 1], [], []>} : vector<1x256xbf16>, vector<256x128xbf16>, vector<1x128xf32> -> vector<1x128xf32>
    %58 = arith.addf %13, %57 : vector<1x128xf32>
    %59 = vector.extract_strided_slice %54 {offsets = [8, 0], sizes = [1, 256], strides = [1, 1]} : vector<17x256xf32> to vector<1x256xf32>
    %60 = arith.truncf %59 : vector<1x256xf32> to vector<1x256xbf16>
    %cst_41 = arith.constant dense<0.000000e+00> : vector<1x128xf32>
    %61 = tpu.matmul %60, %12, %cst_41 {dimension_numbers = #tpu.dot_dimension_numbers<[1], [0], [0], [1], [0, 0, 1, 1], [], []>} : vector<1x256xbf16>, vector<256x128xbf16>, vector<1x128xf32> -> vector<1x128xf32>
    %62 = arith.addf %58, %61 : vector<1x128xf32>
    %c0_42 = arith.constant 0 : index
    %c0_43 = arith.constant 0 : index
    %63 = vector.load %arg15[%c0_42, %c0_43] : memref<2x128xf32, #tpu.memory_space<vmem>>, vector<1x128xf32>
    tpu.vector_store %arg15[%c0_42, %c0_43], %62 {strides = array<i32>} : memref<2x128xf32, #tpu.memory_space<vmem>>, vector<1x128xf32>,
    %c1 = arith.constant 1 : index
    %c0_44 = arith.constant 0 : index
    %c0_45 = arith.constant 0 : index
    %64 = vector.load %arg0[%c1, %c0_44, %c0_45] : memref<2x24x128xf32, #tpu.memory_space<vmem>>, vector<1x24x128xf32>
    %65 = vector.shape_cast %64 : vector<1x24x128xf32> to vector<24x128xf32>
    %66 = arith.truncf %65 : vector<24x128xf32> to vector<24x128xbf16>
    %cst_46 = arith.constant dense<0.000000e+00> : vector<24x128xf32>
    %67 = tpu.matmul %66, %0, %cst_46 {dimension_numbers = #tpu.dot_dimension_numbers<[1], [0], [0], [1], [0, 0, 1, 1], [], []>} : vector<24x128xbf16>, vector<128x128xbf16>, vector<24x128xf32> -> vector<24x128xf32>
    %68 = vector.broadcast %1 : vector<1x128xf32> to vector<24x128xf32>
    %69 = arith.addf %67, %68 : vector<24x128xf32>
    %cst_47 = arith.constant 0.000000e+00 : f32
    %70 = vector.broadcast %cst_47 : f32 to vector<24x128xf32>
    %71 = arith.maximumf %69, %70 : vector<24x128xf32>
    %72 = vector.extract_strided_slice %71 {offsets = [0, 0], sizes = [23, 128], strides = [1, 1]} : vector<24x128xf32> to vector<23x128xf32>
    %73 = arith.truncf %72 : vector<23x128xf32> to vector<23x128xbf16>
    %cst_48 = arith.constant dense<0.000000e+00> : vector<23x128xf32>
    %74 = tpu.matmul %73, %2, %cst_48 {dimension_numbers = #tpu.dot_dimension_numbers<[1], [0], [0], [1], [0, 0, 1, 1], [], []>} : vector<23x128xbf16>, vector<128x128xbf16>, vector<23x128xf32> -> vector<23x128xf32>
    %75 = vector.extract_strided_slice %71 {offsets = [1, 0], sizes = [23, 128], strides = [1, 1]} : vector<24x128xf32> to vector<23x128xf32>
    %76 = arith.truncf %75 : vector<23x128xf32> to vector<23x128xbf16>
    %cst_49 = arith.constant dense<0.000000e+00> : vector<23x128xf32>
    %77 = tpu.matmul %76, %3, %cst_49 {dimension_numbers = #tpu.dot_dimension_numbers<[1], [0], [0], [1], [0, 0, 1, 1], [], []>} : vector<23x128xbf16>, vector<128x128xbf16>, vector<23x128xf32> -> vector<23x128xf32>
    %78 = arith.addf %74, %77 : vector<23x128xf32>
    %79 = vector.broadcast %4 : vector<1x128xf32> to vector<23x128xf32>
    %80 = arith.addf %78, %79 : vector<23x128xf32>
    %cst_50 = arith.constant 0.000000e+00 : f32
    %81 = vector.broadcast %cst_50 : f32 to vector<23x128xf32>
    %82 = arith.maximumf %80, %81 : vector<23x128xf32>
    %83 = vector.extract_strided_slice %82 {offsets = [0, 0], sizes = [21, 128], strides = [1, 1]} : vector<23x128xf32> to vector<21x128xf32>
    %84 = arith.truncf %83 : vector<21x128xf32> to vector<21x128xbf16>
    %cst_51 = arith.constant dense<0.000000e+00> : vector<21x128xf32>
    %85 = tpu.matmul %84, %5, %cst_51 {dimension_numbers = #tpu.dot_dimension_numbers<[1], [0], [0], [1], [0, 0, 1, 1], [], []>} : vector<21x128xbf16>, vector<128x128xbf16>, vector<21x128xf32> -> vector<21x128xf32>
    %86 = vector.extract_strided_slice %82 {offsets = [2, 0], sizes = [21, 128], strides = [1, 1]} : vector<23x128xf32> to vector<21x128xf32>
    %87 = arith.truncf %86 : vector<21x128xf32> to vector<21x128xbf16>
    %cst_52 = arith.constant dense<0.000000e+00> : vector<21x128xf32>
    %88 = tpu.matmul %87, %6, %cst_52 {dimension_numbers = #tpu.dot_dimension_numbers<[1], [0], [0], [1], [0, 0, 1, 1], [], []>} : vector<21x128xbf16>, vector<128x128xbf16>, vector<21x128xf32> -> vector<21x128xf32>
    %89 = arith.addf %85, %88 : vector<21x128xf32>
    %90 = vector.broadcast %7 : vector<1x128xf32> to vector<21x128xf32>
    %91 = arith.addf %89, %90 : vector<21x128xf32>
    %cst_53 = arith.constant 0.000000e+00 : f32
    %92 = vector.broadcast %cst_53 : f32 to vector<21x128xf32>
    %93 = arith.maximumf %91, %92 : vector<21x128xf32>
    %94 = vector.extract_strided_slice %93 {offsets = [0, 0], sizes = [17, 128], strides = [1, 1]} : vector<21x128xf32> to vector<17x128xf32>
    %95 = arith.truncf %94 : vector<17x128xf32> to vector<17x128xbf16>
    %cst_54 = arith.constant dense<0.000000e+00> : vector<17x256xf32>
    %96 = tpu.matmul %95, %8, %cst_54 {dimension_numbers = #tpu.dot_dimension_numbers<[1], [0], [0], [1], [0, 0, 1, 1], [], []>} : vector<17x128xbf16>, vector<128x256xbf16>, vector<17x256xf32> -> vector<17x256xf32>
    %97 = vector.extract_strided_slice %93 {offsets = [4, 0], sizes = [17, 128], strides = [1, 1]} : vector<21x128xf32> to vector<17x128xf32>
    %98 = arith.truncf %97 : vector<17x128xf32> to vector<17x128xbf16>
    %cst_55 = arith.constant dense<0.000000e+00> : vector<17x256xf32>
    %99 = tpu.matmul %98, %9, %cst_55 {dimension_numbers = #tpu.dot_dimension_numbers<[1], [0], [0], [1], [0, 0, 1, 1], [], []>} : vector<17x128xbf16>, vector<128x256xbf16>, vector<17x256xf32> -> vector<17x256xf32>
    %100 = arith.addf %96, %99 : vector<17x256xf32>
    %101 = vector.broadcast %10 : vector<1x256xf32> to vector<17x256xf32>
    %102 = arith.addf %100, %101 : vector<17x256xf32>
    %cst_56 = arith.constant 0.000000e+00 : f32
    %103 = vector.broadcast %cst_56 : f32 to vector<17x256xf32>
    %104 = arith.maximumf %102, %103 : vector<17x256xf32>
    %105 = vector.extract_strided_slice %104 {offsets = [0, 0], sizes = [1, 256], strides = [1, 1]} : vector<17x256xf32> to vector<1x256xf32>
    %106 = arith.truncf %105 : vector<1x256xf32> to vector<1x256xbf16>
    %cst_57 = arith.constant dense<0.000000e+00> : vector<1x128xf32>
    %107 = tpu.matmul %106, %11, %cst_57 {dimension_numbers = #tpu.dot_dimension_numbers<[1], [0], [0], [1], [0, 0, 1, 1], [], []>} : vector<1x256xbf16>, vector<256x128xbf16>, vector<1x128xf32> -> vector<1x128xf32>
    %108 = arith.addf %13, %107 : vector<1x128xf32>
    %109 = vector.extract_strided_slice %104 {offsets = [8, 0], sizes = [1, 256], strides = [1, 1]} : vector<17x256xf32> to vector<1x256xf32>
    %110 = arith.truncf %109 : vector<1x256xf32> to vector<1x256xbf16>
    %cst_58 = arith.constant dense<0.000000e+00> : vector<1x128xf32>
    %111 = tpu.matmul %110, %12, %cst_58 {dimension_numbers = #tpu.dot_dimension_numbers<[1], [0], [0], [1], [0, 0, 1, 1], [], []>} : vector<1x256xbf16>, vector<256x128xbf16>, vector<1x128xf32> -> vector<1x128xf32>
    %112 = arith.addf %108, %111 : vector<1x128xf32>
    %c1_59 = arith.constant 1 : index
    %c0_60 = arith.constant 0 : index
    %113 = vector.load %arg15[%c1_59, %c0_60] : memref<2x128xf32, #tpu.memory_space<vmem>>, vector<1x128xf32>
    tpu.vector_store %arg15[%c1_59, %c0_60], %112 {strides = array<i32>} : memref<2x128xf32, #tpu.memory_space<vmem>>, vector<1x128xf32>,
    return
  }
}

</mosaic_0001>

<llo_original>
// kernel: mnist1d_convnet_forward.1
$region0: #{mnist1d_convnet_forward.1}
  #allocation0 [shape = 'u32[]', space=smem, size = 0x4, offset = 0x4, fixed_abs, tag = 'smem constant byte address 0x4 - core index']
  #allocation1 [shape = 'u32[144,128]{1,0:T(1,128)}', space=vmem, size = 0x12000, scoped, tag = 'internal scratch']
  %s0 = inlined_call_operand.vmem [shape: f32[2,24,128], index: 0, kind: input, shape index: {}]
  %s1 = inlined_call_operand.hbm [shape: bf16[128,128], index: 1, kind: input, shape index: {}]
  %s2 = inlined_call_operand.vmem [shape: f32[1,128], index: 2, kind: input, shape index: {}]
  %s3 = inlined_call_operand.hbm [shape: bf16[128,128], index: 3, kind: input, shape index: {}]
  %s4 = inlined_call_operand.hbm [shape: bf16[128,128], index: 4, kind: input, shape index: {}]
  %s5 = inlined_call_operand.vmem [shape: f32[1,128], index: 5, kind: input, shape index: {}]
  %s6 = inlined_call_operand.hbm [shape: bf16[128,128], index: 6, kind: input, shape index: {}]
  %s7 = inlined_call_operand.hbm [shape: bf16[128,128], index: 7, kind: input, shape index: {}]
  %s8 = inlined_call_operand.vmem [shape: f32[1,128], index: 8, kind: input, shape index: {}]
  %s9 = inlined_call_operand.vmem [shape: bf16[128,256], index: 9, kind: input, shape index: {}]
  %s10 = inlined_call_operand.hbm [shape: bf16[128,256], index: 10, kind: input, shape index: {}]
  %s11 = inlined_call_operand.vmem [shape: f32[1,256], index: 11, kind: input, shape index: {}]
  %s12 = inlined_call_operand.hbm [shape: bf16[256,128], index: 12, kind: input, shape index: {}]
  %s13 = inlined_call_operand.hbm [shape: bf16[256,128], index: 13, kind: input, shape index: {}]
  %s14 = inlined_call_operand.vmem [shape: f32[1,128], index: 14, kind: input, shape index: {}]
  %s15 = inlined_call_operand.hbm [shape: f32[2,128], index: 15, kind: output, shape index: {}]
  %s16 = sld [smem:[#allocation0]]
  $region102: #{mnist1d_convnet_forward.1} parent=0
    _
  %s18 = ssub.s32 1, %s16
  %s19 = scalar_select 0, %s18, %s16
  $region1: #{mnist1d_convnet_forward.1} parent=0
    #allocation2 [shape = 'u8[32768]{0}', space=vmem, size = 0x8000, scoped, tag = 'input window, operand 1, single buffered']
    #allocation3 [shape = 's32[1]{0}', space=sflag, size = 0x4, scoped, tag = 'scoped memory for mnist1d_convnet_forward.1']
    #allocation4 [shape = 's32[1]{0}', space=sflag, size = 0x4, scoped, tag = 'scoped memory for mnist1d_convnet_forward.1']
    #allocation5 [shape = 'u8[32768]{0}', space=vmem, size = 0x8000, scoped, tag = 'input window, operand 3, single buffered']
    #allocation6 [shape = 's32[1]{0}', space=sflag, size = 0x4, scoped, tag = 'scoped memory for mnist1d_convnet_forward.1']
    #allocation7 [shape = 'u8[32768]{0}', space=vmem, size = 0x8000, scoped, tag = 'input window, operand 4, single buffered']
    #allocation8 [shape = 'u8[32768]{0}', space=vmem, size = 0x8000, scoped, tag = 'input window, operand 6, single buffered']
    #allocation9 [shape = 's32[1]{0}', space=sflag, size = 0x4, scoped, tag = 'scoped memory for mnist1d_convnet_forward.1']
    #allocation10 [shape = 'u8[32768]{0}', space=vmem, size = 0x8000, scoped, tag = 'input window, operand 7, single buffered']
    #allocation11 [shape = 'u8[65536]{0}', space=vmem, size = 0x10000, scoped, tag = 'input window, operand 10, single buffered']
    #allocation12 [shape = 's32[1]{0}', space=sflag, size = 0x4, scoped, tag = 'scoped memory for mnist1d_convnet_forward.1']
    #allocation13 [shape = 'u8[65536]{0}', space=vmem, size = 0x10000, scoped, tag = 'input window, operand 12, single buffered']
    #allocation14 [shape = 'u8[65536]{0}', space=vmem, size = 0x10000, scoped, tag = 'input window, operand 13, single buffered']
    #allocation15 [shape = 's32[1]{0}', space=sflag, size = 0x4, scoped, tag = 'scoped memory for mnist1d_convnet_forward.1']
    #allocation16 [shape = 'u8[1024]{0}', space=vmem, size = 0x400, scoped, tag = 'output window, operand 0, single buffered']
    %20 = vsyncpa [#allocation3], 0
    %21 = vsyncpa [#allocation6], 0
    %22 = vsyncpa [#allocation9], 0
    %23 = vsyncpa [#allocation12], 0
    %24 = vsyncpa [#allocation15], 0
    %25 = vsyncpa [#allocation4], 0
    // Predicated region
    $region2: #{mnist1d_convnet_forward.1} parent=1 // pred_check
      _
    $region3: #{mnist1d_convnet_forward.1} parent=1 // pred_check_branch
      %27 = sbr.rel (0) target = $region5
    $region4: #{mnist1d_convnet_forward.1} parent=1 // pred_region
      _
    $region5: #{mnist1d_convnet_forward.1} parent=1 // pred_fallthru
      _
    // Predicated region
    $region6: #{mnist1d_convnet_forward.1} parent=1 // pred_check
      _
    $region7: #{mnist1d_convnet_forward.1} parent=1 // pred_check_branch
      %29 = sbr.rel (0) target = $region9
    $region8: #{mnist1d_convnet_forward.1} parent=1 // pred_region
      %s31 = ssub.s32 1024, 1024
      %32 = vsyncadd [#allocation3], %s31
      %s33 = sshll.u32 [#allocation2], 4
      %s34 = int_to_ptr.vmem [resolvable:$true] %s33
      %39 = dma.hbm_to_vmem [thread:$0]  %s1, 1024, %s34, [#allocation3], 64, 64, 4
    $region9: #{mnist1d_convnet_forward.1} parent=1 // pred_fallthru
      _
    // Predicated region
    $region10: #{mnist1d_convnet_forward.1} parent=1 // pred_check
      _
    $region11: #{mnist1d_convnet_forward.1} parent=1 // pred_check_branch
      %41 = sbr.rel (0) target = $region13
    $region12: #{mnist1d_convnet_forward.1} parent=1 // pred_region
      _
    $region13: #{mnist1d_convnet_forward.1} parent=1 // pred_fallthru
      _
    // Predicated region
    $region14: #{mnist1d_convnet_forward.1} parent=1 // pred_check
      _
    $region15: #{mnist1d_convnet_forward.1} parent=1 // pred_check_branch
      %43 = sbr.rel (0) target = $region17
    $region16: #{mnist1d_convnet_forward.1} parent=1 // pred_region
      %s45 = ssub.s32 1024, 1024
      %46 = vsyncadd [#allocation6], %s45
      %s47 = sshll.u32 [#allocation5], 4
      %s48 = int_to_ptr.vmem [resolvable:$true] %s47
      %53 = dma.hbm_to_vmem [thread:$0]  %s3, 1024, %s48, [#allocation6], 64, 64, 4
    $region17: #{mnist1d_convnet_forward.1} parent=1 // pred_fallthru
      _
    // Predicated region
    $region18: #{mnist1d_convnet_forward.1} parent=1 // pred_check
      _
    $region19: #{mnist1d_convnet_forward.1} parent=1 // pred_check_branch
      %55 = sbr.rel (0) target = $region21
    $region20: #{mnist1d_convnet_forward.1} parent=1 // pred_region
      %s57 = ssub.s32 1024, 1024
      %58 = vsyncadd [#allocation6], %s57
      %s59 = sshll.u32 [#allocation7], 4
      %s60 = int_to_ptr.vmem [resolvable:$true] %s59
      %65 = dma.hbm_to_vmem [thread:$0]  %s4, 1024, %s60, [#allocation6], 64, 64, 4
    $region21: #{mnist1d_convnet_forward.1} parent=1 // pred_fallthru
      _
    // Predicated region
    $region22: #{mnist1d_convnet_forward.1} parent=1 // pred_check
      _
    $region23: #{mnist1d_convnet_forward.1} parent=1 // pred_check_branch
      %67 = sbr.rel (0) target = $region25
    $region24: #{mnist1d_convnet_forward.1} parent=1 // pred_region
      _
    $region25: #{mnist1d_convnet_forward.1} parent=1 // pred_fallthru
      _
    // Predicated region
    $region26: #{mnist1d_convnet_forward.1} parent=1 // pred_check
      _
    $region27: #{mnist1d_convnet_forward.1} parent=1 // pred_check_branch
      %69 = sbr.rel (0) target = $region29
    $region28: #{mnist1d_convnet_forward.1} parent=1 // pred_region
      %s71 = ssub.s32 1024, 1024
      %72 = vsyncadd [#allocation9], %s71
      %s73 = sshll.u32 [#allocation8], 4
      %s74 = int_to_ptr.vmem [resolvable:$true] %s73
      %79 = dma.hbm_to_vmem [thread:$0]  %s6, 1024, %s74, [#allocation9], 64, 64, 4
    $region29: #{mnist1d_convnet_forward.1} parent=1 // pred_fallthru
      _
    // Predicated region
    $region30: #{mnist1d_convnet_forward.1} parent=1 // pred_check
      _
    $region31: #{mnist1d_convnet_forward.1} parent=1 // pred_check_branch
      %81 = sbr.rel (0) target = $region33
    $region32: #{mnist1d_convnet_forward.1} parent=1 // pred_region
      %s83 = ssub.s32 1024, 1024
      %84 = vsyncadd [#allocation9], %s83
      %s85 = sshll.u32 [#allocation10], 4
      %s86 = int_to_ptr.vmem [resolvable:$true] %s85
      %91 = dma.hbm_to_vmem [thread:$0]  %s7, 1024, %s86, [#allocation9], 64, 64, 4
    $region33: #{mnist1d_convnet_forward.1} parent=1 // pred_fallthru
      _
    // Predicated region
    $region34: #{mnist1d_convnet_forward.1} parent=1 // pred_check
      _
    $region35: #{mnist1d_convnet_forward.1} parent=1 // pred_check_branch
      %93 = sbr.rel (0) target = $region37
    $region36: #{mnist1d_convnet_forward.1} parent=1 // pred_region
      _
    $region37: #{mnist1d_convnet_forward.1} parent=1 // pred_fallthru
      _
    // Predicated region
    $region38: #{mnist1d_convnet_forward.1} parent=1 // pred_check
      _
    $region39: #{mnist1d_convnet_forward.1} parent=1 // pred_check_branch
      %95 = sbr.rel (0) target = $region41
    $region40: #{mnist1d_convnet_forward.1} parent=1 // pred_region
      _
    $region41: #{mnist1d_convnet_forward.1} parent=1 // pred_fallthru
      _
    // Predicated region
    $region42: #{mnist1d_convnet_forward.1} parent=1 // pred_check
      _
    $region43: #{mnist1d_convnet_forward.1} parent=1 // pred_check_branch
      %97 = sbr.rel (0) target = $region45
    $region44: #{mnist1d_convnet_forward.1} parent=1 // pred_region
      %s99 = ssub.s32 2048, 2048
      %100 = vsyncadd [#allocation12], %s99
      %s101 = sshll.u32 [#allocation11], 4
      %s102 = int_to_ptr.vmem [resolvable:$true] %s101
      %107 = dma.hbm_to_vmem [thread:$0]  %s10, 2048, %s102, [#allocation12], 128, 128, 8
    $region45: #{mnist1d_convnet_forward.1} parent=1 // pred_fallthru
      _
    // Predicated region
    $region46: #{mnist1d_convnet_forward.1} parent=1 // pred_check
      _
    $region47: #{mnist1d_convnet_forward.1} parent=1 // pred_check_branch
      %109 = sbr.rel (0) target = $region49
    $region48: #{mnist1d_convnet_forward.1} parent=1 // pred_region
      _
    $region49: #{mnist1d_convnet_forward.1} parent=1 // pred_fallthru
      _
    // Predicated region
    $region50: #{mnist1d_convnet_forward.1} parent=1 // pred_check
      _
    $region51: #{mnist1d_convnet_forward.1} parent=1 // pred_check_branch
      %111 = sbr.rel (0) target = $region53
    $region52: #{mnist1d_convnet_forward.1} parent=1 // pred_region
      %s113 = ssub.s32 2048, 2048
      %114 = vsyncadd [#allocation12], %s113
      %s115 = sshll.u32 [#allocation13], 4
      %s116 = int_to_ptr.vmem [resolvable:$true] %s115
      %121 = dma.hbm_to_vmem [thread:$0]  %s12, 2048, %s116, [#allocation12], 64, 64, 4
    $region53: #{mnist1d_convnet_forward.1} parent=1 // pred_fallthru
      _
    // Predicated region
    $region54: #{mnist1d_convnet_forward.1} parent=1 // pred_check
      _
    $region55: #{mnist1d_convnet_forward.1} parent=1 // pred_check_branch
      %123 = sbr.rel (0) target = $region57
    $region56: #{mnist1d_convnet_forward.1} parent=1 // pred_region
      %s125 = ssub.s32 2048, 2048
      %126 = vsyncadd [#allocation15], %s125
      %s127 = sshll.u32 [#allocation14], 4
      %s128 = int_to_ptr.vmem [resolvable:$true] %s127
      %133 = dma.hbm_to_vmem [thread:$0]  %s13, 2048, %s128, [#allocation15], 64, 64, 4
    $region57: #{mnist1d_convnet_forward.1} parent=1 // pred_fallthru
      _
    // Predicated region
    $region58: #{mnist1d_convnet_forward.1} parent=1 // pred_check
      _
    $region59: #{mnist1d_convnet_forward.1} parent=1 // pred_check_branch
      %135 = sbr.rel (0) target = $region61
    $region60: #{mnist1d_convnet_forward.1} parent=1 // pred_region
      _
    $region61: #{mnist1d_convnet_forward.1} parent=1 // pred_fallthru
      _
    // Predicated region
    $region62: #{mnist1d_convnet_forward.1} parent=1 // pred_check
      _
    $region63: #{mnist1d_convnet_forward.1} parent=1 // pred_check_branch
      %137 = sbr.rel (0) target = $region65
    $region64: #{mnist1d_convnet_forward.1} parent=1 // pred_region
      %138 = dma.done [#allocation3], 1024
    $region65: #{mnist1d_convnet_forward.1} parent=1 // pred_fallthru
      _
    // Predicated region
    $region66: #{mnist1d_convnet_forward.1} parent=1 // pred_check
      _
    $region67: #{mnist1d_convnet_forward.1} parent=1 // pred_check_branch
      %140 = sbr.rel (0) target = $region69
    $region68: #{mnist1d_convnet_forward.1} parent=1 // pred_region
      %141 = dma.done [#allocation6], 1024
    $region69: #{mnist1d_convnet_forward.1} parent=1 // pred_fallthru
      _
    // Predicated region
    $region70: #{mnist1d_convnet_forward.1} parent=1 // pred_check
      _
    $region71: #{mnist1d_convnet_forward.1} parent=1 // pred_check_branch
      %143 = sbr.rel (0) target = $region73
    $region72: #{mnist1d_convnet_forward.1} parent=1 // pred_region
      %144 = dma.done [#allocation6], 1024
    $region73: #{mnist1d_convnet_forward.1} parent=1 // pred_fallthru
      _
    // Predicated region
    $region74: #{mnist1d_convnet_forward.1} parent=1 // pred_check
      _
    $region75: #{mnist1d_convnet_forward.1} parent=1 // pred_check_branch
      %146 = sbr.rel (0) target = $region77
    $region76: #{mnist1d_convnet_forward.1} parent=1 // pred_region
      %147 = dma.done [#allocation9], 1024
    $region77: #{mnist1d_convnet_forward.1} parent=1 // pred_fallthru
      _
    // Predicated region
    $region78: #{mnist1d_convnet_forward.1} parent=1 // pred_check
      _
    $region79: #{mnist1d_convnet_forward.1} parent=1 // pred_check_branch
      %149 = sbr.rel (0) target = $region81
    $region80: #{mnist1d_convnet_forward.1} parent=1 // pred_region
      %150 = dma.done [#allocation9], 1024
    $region81: #{mnist1d_convnet_forward.1} parent=1 // pred_fallthru
      _
    // Predicated region
    $region82: #{mnist1d_convnet_forward.1} parent=1 // pred_check
      _
    $region83: #{mnist1d_convnet_forward.1} parent=1 // pred_check_branch
      %152 = sbr.rel (0) target = $region85
    $region84: #{mnist1d_convnet_forward.1} parent=1 // pred_region
      %153 = dma.done [#allocation12], 2048
    $region85: #{mnist1d_convnet_forward.1} parent=1 // pred_fallthru
      _
    // Predicated region
    $region86: #{mnist1d_convnet_forward.1} parent=1 // pred_check
      _
    $region87: #{mnist1d_convnet_forward.1} parent=1 // pred_check_branch
      %155 = sbr.rel (0) target = $region89
    $region88: #{mnist1d_convnet_forward.1} parent=1 // pred_region
      %156 = dma.done [#allocation12], 2048
    $region89: #{mnist1d_convnet_forward.1} parent=1 // pred_fallthru
      _
    // Predicated region
    $region90: #{mnist1d_convnet_forward.1} parent=1 // pred_check
      _
    $region91: #{mnist1d_convnet_forward.1} parent=1 // pred_check_branch
      %158 = sbr.rel (0) target = $region93
    $region92: #{mnist1d_convnet_forward.1} parent=1 // pred_region
      %159 = dma.done [#allocation15], 2048
    $region93: #{mnist1d_convnet_forward.1} parent=1 // pred_fallthru
      _
    %v161 = vld [vmem:[#allocation2] sm:$0xf]
    %v162 = vld [vmem:[#allocation2 + $0x4] sm:$0xf]
    %v163 = vld [vmem:[#allocation2 + $0x8] sm:$0xf]
    %v164 = vld [vmem:[#allocation2 + $0xc] sm:$0xf]
    %v165 = vld [vmem:[#allocation2 + $0x10] sm:$0xf]
    %v166 = vld [vmem:[#allocation2 + $0x14] sm:$0xf]
    %v167 = vld [vmem:[#allocation2 + $0x18] sm:$0xf]
    %v168 = vld [vmem:[#allocation2 + $0x1c] sm:$0xf]
    %v169 = vld [vmem:[#allocation2 + $0x20] sm:$0xf]
    %v170 = vld [vmem:[#allocation2 + $0x24] sm:$0xf]
    %v171 = vld [vmem:[#allocation2 + $0x28] sm:$0xf]
    %v172 = vld [vmem:[#allocation2 + $0x2c] sm:$0xf]
    %v173 = vld [vmem:[#allocation2 + $0x30] sm:$0xf]
    %v174 = vld [vmem:[#allocation2 + $0x34] sm:$0xf]
    %v175 = vld [vmem:[#allocation2 + $0x38] sm:$0xf]
    %v176 = vld [vmem:[#allocation2 + $0x3c] sm:$0xf]
    %v177 = vld [vmem:[%s2] sm:$0x1]
    %v178 = vld [vmem:[#allocation5] sm:$0xf]
    %v179 = vld [vmem:[#allocation5 + $0x4] sm:$0xf]
    %v180 = vld [vmem:[#allocation5 + $0x8] sm:$0xf]
    %v181 = vld [vmem:[#allocation5 + $0xc] sm:$0xf]
    %v182 = vld [vmem:[#allocation5 + $0x10] sm:$0xf]
    %v183 = vld [vmem:[#allocation5 + $0x14] sm:$0xf]
    %v184 = vld [vmem:[#allocation5 + $0x18] sm:$0xf]
    %v185 = vld [vmem:[#allocation5 + $0x1c] sm:$0xf]
    %v186 = vld [vmem:[#allocation5 + $0x20] sm:$0xf]
    %v187 = vld [vmem:[#allocation5 + $0x24] sm:$0xf]
    %v188 = vld [vmem:[#allocation5 + $0x28] sm:$0xf]
    %v189 = vld [vmem:[#allocation5 + $0x2c] sm:$0xf]
    %v190 = vld [vmem:[#allocation5 + $0x30] sm:$0xf]
    %v191 = vld [vmem:[#allocation5 + $0x34] sm:$0xf]
    %v192 = vld [vmem:[#allocation5 + $0x38] sm:$0xf]
    %v193 = vld [vmem:[#allocation5 + $0x3c] sm:$0xf]
    %v194 = vld [vmem:[#allocation7] sm:$0xf]
    %v195 = vld [vmem:[#allocation7 + $0x4] sm:$0xf]
    %v196 = vld [vmem:[#allocation7 + $0x8] sm:$0xf]
    %v197 = vld [vmem:[#allocation7 + $0xc] sm:$0xf]
    %v198 = vld [vmem:[#allocation7 + $0x10] sm:$0xf]
    %v199 = vld [vmem:[#allocation7 + $0x14] sm:$0xf]
    %v200 = vld [vmem:[#allocation7 + $0x18] sm:$0xf]
    %v201 = vld [vmem:[#allocation7 + $0x1c] sm:$0xf]
    %v202 = vld [vmem:[#allocation7 + $0x20] sm:$0xf]
    %v203 = vld [vmem:[#allocation7 + $0x24] sm:$0xf]
    %v204 = vld [vmem:[#allocation7 + $0x28] sm:$0xf]
    %v205 = vld [vmem:[#allocation7 + $0x2c] sm:$0xf]
    %v206 = vld [vmem:[#allocation7 + $0x30] sm:$0xf]
    %v207 = vld [vmem:[#allocation7 + $0x34] sm:$0xf]
    %v208 = vld [vmem:[#allocation7 + $0x38] sm:$0xf]
    %v209 = vld [vmem:[#allocation7 + $0x3c] sm:$0xf]
    %v210 = vld [vmem:[%s5] sm:$0x1]
    %v211 = vld [vmem:[#allocation8] sm:$0xf]
    %v212 = vld [vmem:[#allocation8 + $0x4] sm:$0xf]
    %v213 = vld [vmem:[#allocation8 + $0x8] sm:$0xf]
    %v214 = vld [vmem:[#allocation8 + $0xc] sm:$0xf]
    %v215 = vld [vmem:[#allocation8 + $0x10] sm:$0xf]
    %v216 = vld [vmem:[#allocation8 + $0x14] sm:$0xf]
    %v217 = vld [vmem:[#allocation8 + $0x18] sm:$0xf]
    %v218 = vld [vmem:[#allocation8 + $0x1c] sm:$0xf]
    %v219 = vld [vmem:[#allocation8 + $0x20] sm:$0xf]
    %v220 = vld [vmem:[#allocation8 + $0x24] sm:$0xf]
    %v221 = vld [vmem:[#allocation8 + $0x28] sm:$0xf]
    %v222 = vld [vmem:[#allocation8 + $0x2c] sm:$0xf]
    %v223 = vld [vmem:[#allocation8 + $0x30] sm:$0xf]
    %v224 = vld [vmem:[#allocation8 + $0x34] sm:$0xf]
    %v225 = vld [vmem:[#allocation8 + $0x38] sm:$0xf]
    %v226 = vld [vmem:[#allocation8 + $0x3c] sm:$0xf]
    %v227 = vld [vmem:[#allocation10] sm:$0xf]
    %v228 = vld [vmem:[#allocation10 + $0x4] sm:$0xf]
    %v229 = vld [vmem:[#allocation10 + $0x8] sm:$0xf]
    %v230 = vld [vmem:[#allocation10 + $0xc] sm:$0xf]
    %v231 = vld [vmem:[#allocation10 + $0x10] sm:$0xf]
    %v232 = vld [vmem:[#allocation10 + $0x14] sm:$0xf]
    %v233 = vld [vmem:[#allocation10 + $0x18] sm:$0xf]
    %v234 = vld [vmem:[#allocation10 + $0x1c] sm:$0xf]
    %v235 = vld [vmem:[#allocation10 + $0x20] sm:$0xf]
    %v236 = vld [vmem:[#allocation10 + $0x24] sm:$0xf]
    %v237 = vld [vmem:[#allocation10 + $0x28] sm:$0xf]
    %v238 = vld [vmem:[#allocation10 + $0x2c] sm:$0xf]
    %v239 = vld [vmem:[#allocation10 + $0x30] sm:$0xf]
    %v240 = vld [vmem:[#allocation10 + $0x34] sm:$0xf]
    %v241 = vld [vmem:[#allocation10 + $0x38] sm:$0xf]
    %v242 = vld [vmem:[#allocation10 + $0x3c] sm:$0xf]
    %v243 = vld [vmem:[%s8] sm:$0x1]
    %v244 = vld [vmem:[%s9] sm:$0xff]
    %v245 = vld [vmem:[%s9 + $0x8] sm:$0xff]
    %v246 = vld [vmem:[%s9 + $0x10] sm:$0xff]
    %v247 = vld [vmem:[%s9 + $0x18] sm:$0xff]
    %v248 = vld [vmem:[%s9 + $0x20] sm:$0xff]
    %v249 = vld [vmem:[%s9 + $0x28] sm:$0xff]
    %v250 = vld [vmem:[%s9 + $0x30] sm:$0xff]
    %v251 = vld [vmem:[%s9 + $0x38] sm:$0xff]
    %v252 = vld [vmem:[%s9 + $0x40] sm:$0xff]
    %v253 = vld [vmem:[%s9 + $0x48] sm:$0xff]
    %v254 = vld [vmem:[%s9 + $0x50] sm:$0xff]
    %v255 = vld [vmem:[%s9 + $0x58] sm:$0xff]
    %v256 = vld [vmem:[%s9 + $0x60] sm:$0xff]
    %v257 = vld [vmem:[%s9 + $0x68] sm:$0xff]
    %v258 = vld [vmem:[%s9 + $0x70] sm:$0xff]
    %v259 = vld [vmem:[%s9 + $0x78] sm:$0xff]
    %v260 = vld [vmem:[#allocation11] sm:$0xff]
    %v261 = vld [vmem:[#allocation11 + $0x8] sm:$0xff]
    %v262 = vld [vmem:[#allocation11 + $0x10] sm:$0xff]
    %v263 = vld [vmem:[#allocation11 + $0x18] sm:$0xff]
    %v264 = vld [vmem:[#allocation11 + $0x20] sm:$0xff]
    %v265 = vld [vmem:[#allocation11 + $0x28] sm:$0xff]
    %v266 = vld [vmem:[#allocation11 + $0x30] sm:$0xff]
    %v267 = vld [vmem:[#allocation11 + $0x38] sm:$0xff]
    %v268 = vld [vmem:[#allocation11 + $0x40] sm:$0xff]
    %v269 = vld [vmem:[#allocation11 + $0x48] sm:$0xff]
    %v270 = vld [vmem:[#allocation11 + $0x50] sm:$0xff]
    %v271 = vld [vmem:[#allocation11 + $0x58] sm:$0xff]
    %v272 = vld [vmem:[#allocation11 + $0x60] sm:$0xff]
    %v273 = vld [vmem:[#allocation11 + $0x68] sm:$0xff]
    %v274 = vld [vmem:[#allocation11 + $0x70] sm:$0xff]
    %v275 = vld [vmem:[#allocation11 + $0x78] sm:$0xff]
    %v276 = vld [vmem:[%s11] sm:$0x3]
    %v277 = vld [vmem:[#allocation13] sm:$0xf]
    %v278 = vld [vmem:[#allocation13 + $0x4] sm:$0xf]
    %v279 = vld [vmem:[#allocation13 + $0x8] sm:$0xf]
    %v280 = vld [vmem:[#allocation13 + $0xc] sm:$0xf]
    %v281 = vld [vmem:[#allocation13 + $0x10] sm:$0xf]
    %v282 = vld [vmem:[#allocation13 + $0x14] sm:$0xf]
    %v283 = vld [vmem:[#allocation13 + $0x18] sm:$0xf]
    %v284 = vld [vmem:[#allocation13 + $0x1c] sm:$0xf]
    %v285 = vld [vmem:[#allocation13 + $0x20] sm:$0xf]
    %v286 = vld [vmem:[#allocation13 + $0x24] sm:$0xf]
    %v287 = vld [vmem:[#allocation13 + $0x28] sm:$0xf]
    %v288 = vld [vmem:[#allocation13 + $0x2c] sm:$0xf]
    %v289 = vld [vmem:[#allocation13 + $0x30] sm:$0xf]
    %v290 = vld [vmem:[#allocation13 + $0x34] sm:$0xf]
    %v291 = vld [vmem:[#allocation13 + $0x38] sm:$0xf]
    %v292 = vld [vmem:[#allocation13 + $0x3c] sm:$0xf]
    %v293 = vld [vmem:[#allocation13 + $0x40] sm:$0xf]
    %v294 = vld [vmem:[#allocation13 + $0x44] sm:$0xf]
    %v295 = vld [vmem:[#allocation13 + $0x48] sm:$0xf]
    %v296 = vld [vmem:[#allocation13 + $0x4c] sm:$0xf]
    %v297 = vld [vmem:[#allocation13 + $0x50] sm:$0xf]
    %v298 = vld [vmem:[#allocation13 + $0x54] sm:$0xf]
    %v299 = vld [vmem:[#allocation13 + $0x58] sm:$0xf]
    %v300 = vld [vmem:[#allocation13 + $0x5c] sm:$0xf]
    %v301 = vld [vmem:[#allocation13 + $0x60] sm:$0xf]
    %v302 = vld [vmem:[#allocation13 + $0x64] sm:$0xf]
    %v303 = vld [vmem:[#allocation13 + $0x68] sm:$0xf]
    %v304 = vld [vmem:[#allocation13 + $0x6c] sm:$0xf]
    %v305 = vld [vmem:[#allocation13 + $0x70] sm:$0xf]
    %v306 = vld [vmem:[#allocation13 + $0x74] sm:$0xf]
    %v307 = vld [vmem:[#allocation13 + $0x78] sm:$0xf]
    %v308 = vld [vmem:[#allocation13 + $0x7c] sm:$0xf]
    %v309 = vld [vmem:[#allocation14] sm:$0xf]
    %v310 = vld [vmem:[#allocation14 + $0x4] sm:$0xf]
    %v311 = vld [vmem:[#allocation14 + $0x8] sm:$0xf]
    %v312 = vld [vmem:[#allocation14 + $0xc] sm:$0xf]
    %v313 = vld [vmem:[#allocation14 + $0x10] sm:$0xf]
    %v314 = vld [vmem:[#allocation14 + $0x14] sm:$0xf]
    %v315 = vld [vmem:[#allocation14 + $0x18] sm:$0xf]
    %v316 = vld [vmem:[#allocation14 + $0x1c] sm:$0xf]
    %v317 = vld [vmem:[#allocation14 + $0x20] sm:$0xf]
    %v318 = vld [vmem:[#allocation14 + $0x24] sm:$0xf]
    %v319 = vld [vmem:[#allocation14 + $0x28] sm:$0xf]
    %v320 = vld [vmem:[#allocation14 + $0x2c] sm:$0xf]
    %v321 = vld [vmem:[#allocation14 + $0x30] sm:$0xf]
    %v322 = vld [vmem:[#allocation14 + $0x34] sm:$0xf]
    %v323 = vld [vmem:[#allocation14 + $0x38] sm:$0xf]
    %v324 = vld [vmem:[#allocation14 + $0x3c] sm:$0xf]
    %v325 = vld [vmem:[#allocation14 + $0x40] sm:$0xf]
    %v326 = vld [vmem:[#allocation14 + $0x44] sm:$0xf]
    %v327 = vld [vmem:[#allocation14 + $0x48] sm:$0xf]
    %v328 = vld [vmem:[#allocation14 + $0x4c] sm:$0xf]
    %v329 = vld [vmem:[#allocation14 + $0x50] sm:$0xf]
    %v330 = vld [vmem:[#allocation14 + $0x54] sm:$0xf]
    %v331 = vld [vmem:[#allocation14 + $0x58] sm:$0xf]
    %v332 = vld [vmem:[#allocation14 + $0x5c] sm:$0xf]
    %v333 = vld [vmem:[#allocation14 + $0x60] sm:$0xf]
    %v334 = vld [vmem:[#allocation14 + $0x64] sm:$0xf]
    %v335 = vld [vmem:[#allocation14 + $0x68] sm:$0xf]
    %v336 = vld [vmem:[#allocation14 + $0x6c] sm:$0xf]
    %v337 = vld [vmem:[#allocation14 + $0x70] sm:$0xf]
    %v338 = vld [vmem:[#allocation14 + $0x74] sm:$0xf]
    %v339 = vld [vmem:[#allocation14 + $0x78] sm:$0xf]
    %v340 = vld [vmem:[#allocation14 + $0x7c] sm:$0xf]
    %v341 = vld [vmem:[%s14] sm:$0x1]
    %v342 = vld [vmem:[%s0] sm:$0xff]
    %v343 = vld [vmem:[%s0 + $0x8] sm:$0xff]
    %v344 = vld [vmem:[%s0 + $0x10] sm:$0xff]
    %v345 = vpack.c.bf16 %v343, %v342
    %v346 = vpack.c.bf16 %v344, %v344
    %v348 = vlaneseq
    %v349 = vshrl.u32 %v348, 7
    %v350 = vsub.s32 0, %v349
    %v351 = vrot.slane %v177, %v350
    %v369 = vunpack.c.l.b16 %v161
    %v370 = vunpack.c.l.b16 %v162
    %v371 = vunpack.c.l.b16 %v163
    %v372 = vunpack.c.l.b16 %v164
    %v373 = vunpack.c.l.b16 %v165
    %v374 = vunpack.c.l.b16 %v166
    %v375 = vunpack.c.l.b16 %v167
    %v376 = vunpack.c.l.b16 %v168
    %v377 = vunpack.c.l.b16 %v169
    %v378 = vunpack.c.l.b16 %v170
    %v379 = vunpack.c.l.b16 %v171
    %v380 = vunpack.c.l.b16 %v172
    %v381 = vunpack.c.l.b16 %v173
    %v382 = vunpack.c.l.b16 %v174
    %v383 = vunpack.c.l.b16 %v175
    %v384 = vunpack.c.l.b16 %v176
    %v385 = vpack.c.b16 %v370, %v369
    %v386 = vpack.c.b16 %v372, %v371
    %v387 = vpack.c.b16 %v374, %v373
    %v388 = vpack.c.b16 %v376, %v375
    %v389 = vpack.c.b16 %v378, %v377
    %v390 = vpack.c.b16 %v380, %v379
    %v391 = vpack.c.b16 %v382, %v381
    %v392 = vpack.c.b16 %v384, %v383
    %401 = vmatprep.subr.bf16.mxu0 0
    %402 = vmatpush1.bf16.msra.mxu0 %v392
    %403 = vmatprep.subr.bf16.mxu0 0
    %404 = vmatpush1.bf16.msra.mxu0 %v391
    %405 = vmatprep.subr.bf16.mxu0 0
    %406 = vmatpush1.bf16.msra.mxu0 %v390
    %407 = vmatprep.subr.bf16.mxu0 0
    %408 = vmatpush1.bf16.msra.mxu0 %v389
    %409 = vmatprep.subr.bf16.mxu0 0
    %410 = vmatpush1.bf16.msra.mxu0 %v388
    %411 = vmatprep.subr.bf16.mxu0 0
    %412 = vmatpush1.bf16.msra.mxu0 %v387
    %413 = vmatprep.subr.bf16.mxu0 0
    %414 = vmatpush1.bf16.msra.mxu0 %v386
    %415 = vmatprep.subr.bf16.mxu0 0
    %416 = vmatpush1.bf16.msra.mxu0 %v385
    %417 = vmatprep.subr.bf16.mxu0 0
    %418 = vmatpush2.bf16.msra.mxu0 0
    %419 = vmatprep.subr.bf16.mxu0 0
    %420 = vmatpush2.bf16.msra.mxu0 0
    %421 = vmatprep.subr.bf16.mxu0 0
    %422 = vmatpush2.bf16.msra.mxu0 0
    %423 = vmatprep.subr.bf16.mxu0 0
    %424 = vmatpush2.bf16.msra.mxu0 0
    %425 = vmatprep.subr.bf16.mxu0 0
    %426 = vmatpush2.bf16.msra.mxu0 0
    %427 = vmatprep.subr.bf16.mxu0 0
    %428 = vmatpush2.bf16.msra.mxu0 0
    %429 = vmatprep.subr.bf16.mxu0 0
    %430 = vmatpush2.bf16.msra.mxu0 0
    %431 = vmatprep.subr.bf16.mxu0 0
    %432 = vmatpush2.bf16.msra.mxu0 0
    %433 = vmatprep.mubr.bf16.mxu0 0
    %434 = vmatmul.mubr.bf16.gmra.mxu0 %v345
    %v435 = vpop.f32.mrf.mxu0
    %v436 = vadd.f32 %v351, %v435
    %v437 = vpop.f32.mrf.mxu0
    %v438 = vpop.f32.mrf.mxu0
    %v439 = vadd.f32 %v351, %v438
    %v440 = vpop.f32.mrf.mxu0
    %441 = vmatprep.mubr.bf16.mxu0 0
    %442 = vmatmul.mubr.bf16.gmra.mxu0 %v346
    %v443 = vpop.f32.mrf.mxu0
    %v444 = vadd.f32 %v351, %v443
    %v445 = vpop.f32.mrf.mxu0
    %v446 = vpop.f32.mrf.mxu0
    %v447 = vpop.f32.mrf.mxu0
    %448 = vdwg.mxu0
    %v449 = vmax.f32 %v436, 0.0
    %v450 = vmax.f32 %v439, 0.0
    %v451 = vmax.f32 %v444, 0.0
    %v452 = vpack.c.bf16 %v450, %v449
    %v453 = vpack.c.bf16 %v451, %v451
    %vm454 = vsmask.f32 7424
    %v456 = vshrl.u32 %v452, 16
    %v458 = vshll.u32 %v452, 16
    %v460 = vrot.slane %v458, 1
    %v461 = vor.u32 %v456, %v460
    %v463 = vshll.u32 %v453, 16
    %v465 = vrot.slane %v463, 1
    %v466 = vsel %vm454, %v461, %v465
    %v467 = vshrl.u32 %v453, 16
    %v469 = vor.u32 %v467, %v465
    %v488 = vunpack.c.l.b16 %v194
    %v489 = vunpack.c.l.b16 %v195
    %v490 = vunpack.c.l.b16 %v196
    %v491 = vunpack.c.l.b16 %v197
    %v492 = vunpack.c.l.b16 %v198
    %v493 = vunpack.c.l.b16 %v199
    %v494 = vunpack.c.l.b16 %v200
    %v495 = vunpack.c.l.b16 %v201
    %v496 = vunpack.c.l.b16 %v202
    %v497 = vunpack.c.l.b16 %v203
    %v498 = vunpack.c.l.b16 %v204
    %v499 = vunpack.c.l.b16 %v205
    %v500 = vunpack.c.l.b16 %v206
    %v501 = vunpack.c.l.b16 %v207
    %v502 = vunpack.c.l.b16 %v208
    %v503 = vunpack.c.l.b16 %v209
    %v504 = vpack.c.b16 %v489, %v488
    %v505 = vpack.c.b16 %v491, %v490
    %v506 = vpack.c.b16 %v493, %v492
    %v507 = vpack.c.b16 %v495, %v494
    %v508 = vpack.c.b16 %v497, %v496
    %v509 = vpack.c.b16 %v499, %v498
    %v510 = vpack.c.b16 %v501, %v500
    %v511 = vpack.c.b16 %v503, %v502
    %520 = vmatprep.subr.bf16.mxu0 0
    %521 = vmatpush1.bf16.msra.mxu0 %v511
    %522 = vmatprep.subr.bf16.mxu0 0
    %523 = vmatpush1.bf16.msra.mxu0 %v510
    %524 = vmatprep.subr.bf16.mxu0 0
    %525 = vmatpush1.bf16.msra.mxu0 %v509
    %526 = vmatprep.subr.bf16.mxu0 0
    %527 = vmatpush1.bf16.msra.mxu0 %v508
    %528 = vmatprep.subr.bf16.mxu0 0
    %529 = vmatpush1.bf16.msra.mxu0 %v507
    %530 = vmatprep.subr.bf16.mxu0 0
    %531 = vmatpush1.bf16.msra.mxu0 %v506
    %532 = vmatprep.subr.bf16.mxu0 0
    %533 = vmatpush1.bf16.msra.mxu0 %v505
    %534 = vmatprep.subr.bf16.mxu0 0
    %535 = vmatpush1.bf16.msra.mxu0 %v504
    %536 = vmatprep.subr.bf16.mxu0 0
    %537 = vmatpush2.bf16.msra.mxu0 0
    %538 = vmatprep.subr.bf16.mxu0 0
    %539 = vmatpush2.bf16.msra.mxu0 0
    %540 = vmatprep.subr.bf16.mxu0 0
    %541 = vmatpush2.bf16.msra.mxu0 0
    %542 = vmatprep.subr.bf16.mxu0 0
    %543 = vmatpush2.bf16.msra.mxu0 0
    %544 = vmatprep.subr.bf16.mxu0 0
    %545 = vmatpush2.bf16.msra.mxu0 0
    %546 = vmatprep.subr.bf16.mxu0 0
    %547 = vmatpush2.bf16.msra.mxu0 0
    %548 = vmatprep.subr.bf16.mxu0 0
    %549 = vmatpush2.bf16.msra.mxu0 0
    %550 = vmatprep.subr.bf16.mxu0 0
    %551 = vmatpush2.bf16.msra.mxu0 0
    %552 = vmatprep.mubr.bf16.mxu0 0
    %553 = vmatmul.mubr.bf16.gmra.mxu0 %v466
    %v554 = vpop.f32.mrf.mxu0
    %v555 = vadd.f32 0.0, %v554
    %v556 = vpop.f32.mrf.mxu0
    %v557 = vpop.f32.mrf.mxu0
    %v558 = vadd.f32 0.0, %v557
    %v559 = vpop.f32.mrf.mxu0
    %560 = vmatprep.mubr.bf16.mxu0 0
    %561 = vmatmul.mubr.bf16.gmra.mxu0 %v469
    %v562 = vpop.f32.mrf.mxu0
    %v563 = vadd.f32 0.0, %v562
    %v564 = vpop.f32.mrf.mxu0
    %v565 = vpop.f32.mrf.mxu0
    %v566 = vpop.f32.mrf.mxu0
    %567 = vdwg.mxu0
    %v584 = vunpack.c.l.b16 %v178
    %v585 = vunpack.c.l.b16 %v179
    %v586 = vunpack.c.l.b16 %v180
    %v587 = vunpack.c.l.b16 %v181
    %v588 = vunpack.c.l.b16 %v182
    %v589 = vunpack.c.l.b16 %v183
    %v590 = vunpack.c.l.b16 %v184
    %v591 = vunpack.c.l.b16 %v185
    %v592 = vunpack.c.l.b16 %v186
    %v593 = vunpack.c.l.b16 %v187
    %v594 = vunpack.c.l.b16 %v188
    %v595 = vunpack.c.l.b16 %v189
    %v596 = vunpack.c.l.b16 %v190
    %v597 = vunpack.c.l.b16 %v191
    %v598 = vunpack.c.l.b16 %v192
    %v599 = vunpack.c.l.b16 %v193
    %v600 = vpack.c.b16 %v585, %v584
    %v601 = vpack.c.b16 %v587, %v586
    %v602 = vpack.c.b16 %v589, %v588
    %v603 = vpack.c.b16 %v591, %v590
    %v604 = vpack.c.b16 %v593, %v592
    %v605 = vpack.c.b16 %v595, %v594
    %v606 = vpack.c.b16 %v597, %v596
    %v607 = vpack.c.b16 %v599, %v598
    %616 = vmatprep.subr.bf16.mxu0 0
    %617 = vmatpush1.bf16.msra.mxu0 %v607
    %618 = vmatprep.subr.bf16.mxu0 0
    %619 = vmatpush1.bf16.msra.mxu0 %v606
    %620 = vmatprep.subr.bf16.mxu0 0
    %621 = vmatpush1.bf16.msra.mxu0 %v605
    %622 = vmatprep.subr.bf16.mxu0 0
    %623 = vmatpush1.bf16.msra.mxu0 %v604
    %624 = vmatprep.subr.bf16.mxu0 0
    %625 = vmatpush1.bf16.msra.mxu0 %v603
    %626 = vmatprep.subr.bf16.mxu0 0
    %627 = vmatpush1.bf16.msra.mxu0 %v602
    %628 = vmatprep.subr.bf16.mxu0 0
    %629 = vmatpush1.bf16.msra.mxu0 %v601
    %630 = vmatprep.subr.bf16.mxu0 0
    %631 = vmatpush1.bf16.msra.mxu0 %v600
    %632 = vmatprep.subr.bf16.mxu0 0
    %633 = vmatpush2.bf16.msra.mxu0 0
    %634 = vmatprep.subr.bf16.mxu0 0
    %635 = vmatpush2.bf16.msra.mxu0 0
    %636 = vmatprep.subr.bf16.mxu0 0
    %637 = vmatpush2.bf16.msra.mxu0 0
    %638 = vmatprep.subr.bf16.mxu0 0
    %639 = vmatpush2.bf16.msra.mxu0 0
    %640 = vmatprep.subr.bf16.mxu0 0
    %641 = vmatpush2.bf16.msra.mxu0 0
    %642 = vmatprep.subr.bf16.mxu0 0
    %643 = vmatpush2.bf16.msra.mxu0 0
    %644 = vmatprep.subr.bf16.mxu0 0
    %645 = vmatpush2.bf16.msra.mxu0 0
    %646 = vmatprep.subr.bf16.mxu0 0
    %647 = vmatpush2.bf16.msra.mxu0 0
    %648 = vmatprep.mubr.bf16.mxu0 0
    %649 = vmatmul.mubr.bf16.gmra.mxu0 %v452
    %v650 = vpop.f32.mrf.mxu0
    %v651 = vadd.f32 %v555, %v650
    %v652 = vpop.f32.mrf.mxu0
    %v653 = vpop.f32.mrf.mxu0
    %v654 = vadd.f32 %v558, %v653
    %v655 = vpop.f32.mrf.mxu0
    %656 = vmatprep.mubr.bf16.mxu0 0
    %657 = vmatmul.mubr.bf16.gmra.mxu0 %v453
    %v658 = vpop.f32.mrf.mxu0
    %v659 = vadd.f32 %v563, %v658
    %v660 = vpop.f32.mrf.mxu0
    %v661 = vpop.f32.mrf.mxu0
    %v662 = vpop.f32.mrf.mxu0
    %663 = vdwg.mxu0
    %v665 = vlaneseq
    %v666 = vshrl.u32 %v665, 7
    %v667 = vsub.s32 0, %v666
    %v668 = vrot.slane %v210, %v667
    %v670 = vadd.f32 %v651, %v668
    %v671 = vadd.f32 %v654, %v668
    %v672 = vadd.f32 %v659, %v668
    %v673 = vmax.f32 %v670, 0.0
    %v674 = vmax.f32 %v671, 0.0
    %v675 = vmax.f32 %v672, 0.0
    %v676 = vpack.c.bf16 %v674, %v673
    %v677 = vpack.c.bf16 %v675, %v675
    %vm680 = vcmask 1046528
    %v681 = vrot.slane %v676, 1
    %v682 = vrot.slane %v677, 1
    %v683 = vsel %vm680, %v681, %v682
    %v702 = vunpack.c.l.b16 %v227
    %v703 = vunpack.c.l.b16 %v228
    %v704 = vunpack.c.l.b16 %v229
    %v705 = vunpack.c.l.b16 %v230
    %v706 = vunpack.c.l.b16 %v231
    %v707 = vunpack.c.l.b16 %v232
    %v708 = vunpack.c.l.b16 %v233
    %v709 = vunpack.c.l.b16 %v234
    %v710 = vunpack.c.l.b16 %v235
    %v711 = vunpack.c.l.b16 %v236
    %v712 = vunpack.c.l.b16 %v237
    %v713 = vunpack.c.l.b16 %v238
    %v714 = vunpack.c.l.b16 %v239
    %v715 = vunpack.c.l.b16 %v240
    %v716 = vunpack.c.l.b16 %v241
    %v717 = vunpack.c.l.b16 %v242
    %v718 = vpack.c.b16 %v703, %v702
    %v719 = vpack.c.b16 %v705, %v704
    %v720 = vpack.c.b16 %v707, %v706
    %v721 = vpack.c.b16 %v709, %v708
    %v722 = vpack.c.b16 %v711, %v710
    %v723 = vpack.c.b16 %v713, %v712
    %v724 = vpack.c.b16 %v715, %v714
    %v725 = vpack.c.b16 %v717, %v716
    %734 = vmatprep.subr.bf16.mxu0 0
    %735 = vmatpush1.bf16.msra.mxu0 %v725
    %736 = vmatprep.subr.bf16.mxu0 0
    %737 = vmatpush1.bf16.msra.mxu0 %v724
    %738 = vmatprep.subr.bf16.mxu0 0
    %739 = vmatpush1.bf16.msra.mxu0 %v723
    %740 = vmatprep.subr.bf16.mxu0 0
    %741 = vmatpush1.bf16.msra.mxu0 %v722
    %742 = vmatprep.subr.bf16.mxu0 0
    %743 = vmatpush1.bf16.msra.mxu0 %v721
    %744 = vmatprep.subr.bf16.mxu0 0
    %745 = vmatpush1.bf16.msra.mxu0 %v720
    %746 = vmatprep.subr.bf16.mxu0 0
    %747 = vmatpush1.bf16.msra.mxu0 %v719
    %748 = vmatprep.subr.bf16.mxu0 0
    %749 = vmatpush1.bf16.msra.mxu0 %v718
    %750 = vmatprep.subr.bf16.mxu0 0
    %751 = vmatpush2.bf16.msra.mxu0 0
    %752 = vmatprep.subr.bf16.mxu0 0
    %753 = vmatpush2.bf16.msra.mxu0 0
    %754 = vmatprep.subr.bf16.mxu0 0
    %755 = vmatpush2.bf16.msra.mxu0 0
    %756 = vmatprep.subr.bf16.mxu0 0
    %757 = vmatpush2.bf16.msra.mxu0 0
    %758 = vmatprep.subr.bf16.mxu0 0
    %759 = vmatpush2.bf16.msra.mxu0 0
    %760 = vmatprep.subr.bf16.mxu0 0
    %761 = vmatpush2.bf16.msra.mxu0 0
    %762 = vmatprep.subr.bf16.mxu0 0
    %763 = vmatpush2.bf16.msra.mxu0 0
    %764 = vmatprep.subr.bf16.mxu0 0
    %765 = vmatpush2.bf16.msra.mxu0 0
    %766 = vmatprep.mubr.bf16.mxu0 0
    %767 = vmatmul.mubr.bf16.gmra.mxu0 %v683
    %v768 = vpop.f32.mrf.mxu0
    %v769 = vadd.f32 0.0, %v768
    %v770 = vpop.f32.mrf.mxu0
    %v771 = vpop.f32.mrf.mxu0
    %v772 = vadd.f32 0.0, %v771
    %v773 = vpop.f32.mrf.mxu0
    %774 = vmatprep.mubr.bf16.mxu0 0
    %775 = vmatmul.mubr.bf16.gmra.mxu0 %v682
    %v776 = vpop.f32.mrf.mxu0
    %v777 = vadd.f32 0.0, %v776
    %v778 = vpop.f32.mrf.mxu0
    %v779 = vpop.f32.mrf.mxu0
    %v780 = vpop.f32.mrf.mxu0
    %781 = vdwg.mxu0
    %v798 = vunpack.c.l.b16 %v211
    %v799 = vunpack.c.l.b16 %v212
    %v800 = vunpack.c.l.b16 %v213
    %v801 = vunpack.c.l.b16 %v214
    %v802 = vunpack.c.l.b16 %v215
    %v803 = vunpack.c.l.b16 %v216
    %v804 = vunpack.c.l.b16 %v217
    %v805 = vunpack.c.l.b16 %v218
    %v806 = vunpack.c.l.b16 %v219
    %v807 = vunpack.c.l.b16 %v220
    %v808 = vunpack.c.l.b16 %v221
    %v809 = vunpack.c.l.b16 %v222
    %v810 = vunpack.c.l.b16 %v223
    %v811 = vunpack.c.l.b16 %v224
    %v812 = vunpack.c.l.b16 %v225
    %v813 = vunpack.c.l.b16 %v226
    %v814 = vpack.c.b16 %v799, %v798
    %v815 = vpack.c.b16 %v801, %v800
    %v816 = vpack.c.b16 %v803, %v802
    %v817 = vpack.c.b16 %v805, %v804
    %v818 = vpack.c.b16 %v807, %v806
    %v819 = vpack.c.b16 %v809, %v808
    %v820 = vpack.c.b16 %v811, %v810
    %v821 = vpack.c.b16 %v813, %v812
    %830 = vmatprep.subr.bf16.mxu0 0
    %831 = vmatpush1.bf16.msra.mxu0 %v821
    %832 = vmatprep.subr.bf16.mxu0 0
    %833 = vmatpush1.bf16.msra.mxu0 %v820
    %834 = vmatprep.subr.bf16.mxu0 0
    %835 = vmatpush1.bf16.msra.mxu0 %v819
    %836 = vmatprep.subr.bf16.mxu0 0
    %837 = vmatpush1.bf16.msra.mxu0 %v818
    %838 = vmatprep.subr.bf16.mxu0 0
    %839 = vmatpush1.bf16.msra.mxu0 %v817
    %840 = vmatprep.subr.bf16.mxu0 0
    %841 = vmatpush1.bf16.msra.mxu0 %v816
    %842 = vmatprep.subr.bf16.mxu0 0
    %843 = vmatpush1.bf16.msra.mxu0 %v815
    %844 = vmatprep.subr.bf16.mxu0 0
    %845 = vmatpush1.bf16.msra.mxu0 %v814
    %846 = vmatprep.subr.bf16.mxu0 0
    %847 = vmatpush2.bf16.msra.mxu0 0
    %848 = vmatprep.subr.bf16.mxu0 0
    %849 = vmatpush2.bf16.msra.mxu0 0
    %850 = vmatprep.subr.bf16.mxu0 0
    %851 = vmatpush2.bf16.msra.mxu0 0
    %852 = vmatprep.subr.bf16.mxu0 0
    %853 = vmatpush2.bf16.msra.mxu0 0
    %854 = vmatprep.subr.bf16.mxu0 0
    %855 = vmatpush2.bf16.msra.mxu0 0
    %856 = vmatprep.subr.bf16.mxu0 0
    %857 = vmatpush2.bf16.msra.mxu0 0
    %858 = vmatprep.subr.bf16.mxu0 0
    %859 = vmatpush2.bf16.msra.mxu0 0
    %860 = vmatprep.subr.bf16.mxu0 0
    %861 = vmatpush2.bf16.msra.mxu0 0
    %862 = vmatprep.mubr.bf16.mxu0 0
    %863 = vmatmul.mubr.bf16.gmra.mxu0 %v676
    %v864 = vpop.f32.mrf.mxu0
    %v865 = vadd.f32 %v769, %v864
    %v866 = vpop.f32.mrf.mxu0
    %v867 = vpop.f32.mrf.mxu0
    %v868 = vadd.f32 %v772, %v867
    %v869 = vpop.f32.mrf.mxu0
    %870 = vmatprep.mubr.bf16.mxu0 0
    %871 = vmatmul.mubr.bf16.gmra.mxu0 %v677
    %v872 = vpop.f32.mrf.mxu0
    %v873 = vadd.f32 %v777, %v872
    %v874 = vpop.f32.mrf.mxu0
    %v875 = vpop.f32.mrf.mxu0
    %v876 = vpop.f32.mrf.mxu0
    %877 = vdwg.mxu0
    %v879 = vlaneseq
    %v880 = vshrl.u32 %v879, 7
    %v881 = vsub.s32 0, %v880
    %v882 = vrot.slane %v243, %v881
    %v884 = vadd.f32 %v865, %v882
    %v885 = vadd.f32 %v868, %v882
    %v886 = vadd.f32 %v873, %v882
    %v887 = vmax.f32 %v884, 0.0
    %v888 = vmax.f32 %v885, 0.0
    %v889 = vmax.f32 %v886, 0.0
    %v890 = vpack.c.bf16 %v888, %v887
    %v891 = vpack.c.bf16 %v889, %v889
    %vm894 = vcmask 1045504
    %v895 = vrot.slane %v890, 2
    %v896 = vrot.slane %v891, 2
    %v897 = vsel %vm894, %v895, %v896
    %v916 = vunpack.c.l.b16 %v260
    %v917 = vunpack.c.h.b16 %v260
    %v918 = vunpack.c.l.b16 %v261
    %v919 = vunpack.c.h.b16 %v261
    %v920 = vunpack.c.l.b16 %v262
    %v921 = vunpack.c.h.b16 %v262
    %v922 = vunpack.c.l.b16 %v263
    %v923 = vunpack.c.h.b16 %v263
    %v924 = vunpack.c.l.b16 %v264
    %v925 = vunpack.c.h.b16 %v264
    %v926 = vunpack.c.l.b16 %v265
    %v927 = vunpack.c.h.b16 %v265
    %v928 = vunpack.c.l.b16 %v266
    %v929 = vunpack.c.h.b16 %v266
    %v930 = vunpack.c.l.b16 %v267
    %v931 = vunpack.c.h.b16 %v267
    %v932 = vunpack.c.l.b16 %v268
    %v933 = vunpack.c.h.b16 %v268
    %v934 = vunpack.c.l.b16 %v269
    %v935 = vunpack.c.h.b16 %v269
    %v936 = vunpack.c.l.b16 %v270
    %v937 = vunpack.c.h.b16 %v270
    %v938 = vunpack.c.l.b16 %v271
    %v939 = vunpack.c.h.b16 %v271
    %v940 = vunpack.c.l.b16 %v272
    %v941 = vunpack.c.h.b16 %v272
    %v942 = vunpack.c.l.b16 %v273
    %v943 = vunpack.c.h.b16 %v273
    %v944 = vunpack.c.l.b16 %v274
    %v945 = vunpack.c.h.b16 %v274
    %v946 = vunpack.c.l.b16 %v275
    %v947 = vunpack.c.h.b16 %v275
    %v948 = vpack.c.b16 %v918, %v916
    %v949 = vpack.c.b16 %v919, %v917
    %v950 = vpack.c.b16 %v922, %v920
    %v951 = vpack.c.b16 %v923, %v921
    %v952 = vpack.c.b16 %v926, %v924
    %v953 = vpack.c.b16 %v927, %v925
    %v954 = vpack.c.b16 %v930, %v928
    %v955 = vpack.c.b16 %v931, %v929
    %v956 = vpack.c.b16 %v934, %v932
    %v957 = vpack.c.b16 %v935, %v933
    %v958 = vpack.c.b16 %v938, %v936
    %v959 = vpack.c.b16 %v939, %v937
    %v960 = vpack.c.b16 %v942, %v940
    %v961 = vpack.c.b16 %v943, %v941
    %v962 = vpack.c.b16 %v946, %v944
    %v963 = vpack.c.b16 %v947, %v945
    %980 = vmatprep.subr.bf16.mxu0 %v963
    %981 = vmatpush1.bf16.msra.mxu0 %v962
    %982 = vmatprep.subr.bf16.mxu0 %v961
    %983 = vmatpush1.bf16.msra.mxu0 %v960
    %984 = vmatprep.subr.bf16.mxu0 %v959
    %985 = vmatpush1.bf16.msra.mxu0 %v958
    %986 = vmatprep.subr.bf16.mxu0 %v957
    %987 = vmatpush1.bf16.msra.mxu0 %v956
    %988 = vmatprep.subr.bf16.mxu0 %v955
    %989 = vmatpush1.bf16.msra.mxu0 %v954
    %990 = vmatprep.subr.bf16.mxu0 %v953
    %991 = vmatpush1.bf16.msra.mxu0 %v952
    %992 = vmatprep.subr.bf16.mxu0 %v951
    %993 = vmatpush1.bf16.msra.mxu0 %v950
    %994 = vmatprep.subr.bf16.mxu0 %v949
    %995 = vmatpush1.bf16.msra.mxu0 %v948
    %996 = vmatprep.subr.bf16.mxu0 0
    %997 = vmatpush2.bf16.msra.mxu0 0
    %998 = vmatprep.subr.bf16.mxu0 0
    %999 = vmatpush2.bf16.msra.mxu0 0
    %1000 = vmatprep.subr.bf16.mxu0 0
    %1001 = vmatpush2.bf16.msra.mxu0 0
    %1002 = vmatprep.subr.bf16.mxu0 0
    %1003 = vmatpush2.bf16.msra.mxu0 0
    %1004 = vmatprep.subr.bf16.mxu0 0
    %1005 = vmatpush2.bf16.msra.mxu0 0
    %1006 = vmatprep.subr.bf16.mxu0 0
    %1007 = vmatpush2.bf16.msra.mxu0 0
    %1008 = vmatprep.subr.bf16.mxu0 0
    %1009 = vmatpush2.bf16.msra.mxu0 0
    %1010 = vmatprep.subr.bf16.mxu0 0
    %1011 = vmatpush2.bf16.msra.mxu0 0
    %1012 = vmatprep.mubr.bf16.mxu0 0
    %1013 = vmatmul.mubr.bf16.gmra.mxu0 %v897
    %v1014 = vpop.f32.mrf.mxu0
    %v1015 = vadd.f32 0.0, %v1014
    %v1016 = vpop.f32.mrf.mxu0
    %v1017 = vadd.f32 0.0, %v1016
    %v1018 = vpop.f32.mrf.mxu0
    %v1019 = vadd.f32 0.0, %v1018
    %v1020 = vpop.f32.mrf.mxu0
    %v1021 = vadd.f32 0.0, %v1020
    %1022 = vmatprep.mubr.bf16.mxu0 0
    %1023 = vmatmul.mubr.bf16.gmra.mxu0 %v896
    %v1024 = vpop.f32.mrf.mxu0
    %v1025 = vpop.f32.mrf.mxu0
    %v1026 = vpop.f32.mrf.mxu0
    %v1027 = vpop.f32.mrf.mxu0
    %1028 = vdwg.mxu0
    %v1045 = vunpack.c.l.b16 %v244
    %v1046 = vunpack.c.h.b16 %v244
    %v1047 = vunpack.c.l.b16 %v245
    %v1048 = vunpack.c.h.b16 %v245
    %v1049 = vunpack.c.l.b16 %v246
    %v1050 = vunpack.c.h.b16 %v246
    %v1051 = vunpack.c.l.b16 %v247
    %v1052 = vunpack.c.h.b16 %v247
    %v1053 = vunpack.c.l.b16 %v248
    %v1054 = vunpack.c.h.b16 %v248
    %v1055 = vunpack.c.l.b16 %v249
    %v1056 = vunpack.c.h.b16 %v249
    %v1057 = vunpack.c.l.b16 %v250
    %v1058 = vunpack.c.h.b16 %v250
    %v1059 = vunpack.c.l.b16 %v251
    %v1060 = vunpack.c.h.b16 %v251
    %v1061 = vunpack.c.l.b16 %v252
    %v1062 = vunpack.c.h.b16 %v252
    %v1063 = vunpack.c.l.b16 %v253
    %v1064 = vunpack.c.h.b16 %v253
    %v1065 = vunpack.c.l.b16 %v254
    %v1066 = vunpack.c.h.b16 %v254
    %v1067 = vunpack.c.l.b16 %v255
    %v1068 = vunpack.c.h.b16 %v255
    %v1069 = vunpack.c.l.b16 %v256
    %v1070 = vunpack.c.h.b16 %v256
    %v1071 = vunpack.c.l.b16 %v257
    %v1072 = vunpack.c.h.b16 %v257
    %v1073 = vunpack.c.l.b16 %v258
    %v1074 = vunpack.c.h.b16 %v258
    %v1075 = vunpack.c.l.b16 %v259
    %v1076 = vunpack.c.h.b16 %v259
    %v1077 = vpack.c.b16 %v1047, %v1045
    %v1078 = vpack.c.b16 %v1048, %v1046
    %v1079 = vpack.c.b16 %v1051, %v1049
    %v1080 = vpack.c.b16 %v1052, %v1050
    %v1081 = vpack.c.b16 %v1055, %v1053
    %v1082 = vpack.c.b16 %v1056, %v1054
    %v1083 = vpack.c.b16 %v1059, %v1057
    %v1084 = vpack.c.b16 %v1060, %v1058
    %v1085 = vpack.c.b16 %v1063, %v1061
    %v1086 = vpack.c.b16 %v1064, %v1062
    %v1087 = vpack.c.b16 %v1067, %v1065
    %v1088 = vpack.c.b16 %v1068, %v1066
    %v1089 = vpack.c.b16 %v1071, %v1069
    %v1090 = vpack.c.b16 %v1072, %v1070
    %v1091 = vpack.c.b16 %v1075, %v1073
    %v1092 = vpack.c.b16 %v1076, %v1074
    %1109 = vmatprep.subr.bf16.mxu0 %v1092
    %1110 = vmatpush1.bf16.msra.mxu0 %v1091
    %1111 = vmatprep.subr.bf16.mxu0 %v1090
    %1112 = vmatpush1.bf16.msra.mxu0 %v1089
    %1113 = vmatprep.subr.bf16.mxu0 %v1088
    %1114 = vmatpush1.bf16.msra.mxu0 %v1087
    %1115 = vmatprep.subr.bf16.mxu0 %v1086
    %1116 = vmatpush1.bf16.msra.mxu0 %v1085
    %1117 = vmatprep.subr.bf16.mxu0 %v1084
    %1118 = vmatpush1.bf16.msra.mxu0 %v1083
    %1119 = vmatprep.subr.bf16.mxu0 %v1082
    %1120 = vmatpush1.bf16.msra.mxu0 %v1081
    %1121 = vmatprep.subr.bf16.mxu0 %v1080
    %1122 = vmatpush1.bf16.msra.mxu0 %v1079
    %1123 = vmatprep.subr.bf16.mxu0 %v1078
    %1124 = vmatpush1.bf16.msra.mxu0 %v1077
    %1125 = vmatprep.subr.bf16.mxu0 0
    %1126 = vmatpush2.bf16.msra.mxu0 0
    %1127 = vmatprep.subr.bf16.mxu0 0
    %1128 = vmatpush2.bf16.msra.mxu0 0
    %1129 = vmatprep.subr.bf16.mxu0 0
    %1130 = vmatpush2.bf16.msra.mxu0 0
    %1131 = vmatprep.subr.bf16.mxu0 0
    %1132 = vmatpush2.bf16.msra.mxu0 0
    %1133 = vmatprep.subr.bf16.mxu0 0
    %1134 = vmatpush2.bf16.msra.mxu0 0
    %1135 = vmatprep.subr.bf16.mxu0 0
    %1136 = vmatpush2.bf16.msra.mxu0 0
    %1137 = vmatprep.subr.bf16.mxu0 0
    %1138 = vmatpush2.bf16.msra.mxu0 0
    %1139 = vmatprep.subr.bf16.mxu0 0
    %1140 = vmatpush2.bf16.msra.mxu0 0
    %1141 = vmatprep.mubr.bf16.mxu0 0
    %1142 = vmatmul.mubr.bf16.gmra.mxu0 %v890
    %v1143 = vpop.f32.mrf.mxu0
    %v1144 = vadd.f32 %v1015, %v1143
    %v1145 = vpop.f32.mrf.mxu0
    %v1146 = vadd.f32 %v1017, %v1145
    %v1147 = vpop.f32.mrf.mxu0
    %v1148 = vadd.f32 %v1019, %v1147
    %v1149 = vpop.f32.mrf.mxu0
    %v1150 = vadd.f32 %v1021, %v1149
    %1151 = vmatprep.mubr.bf16.mxu0 0
    %1152 = vmatmul.mubr.bf16.gmra.mxu0 %v891
    %v1153 = vpop.f32.mrf.mxu0
    %v1154 = vpop.f32.mrf.mxu0
    %v1155 = vpop.f32.mrf.mxu0
    %v1156 = vpop.f32.mrf.mxu0
    %1157 = vdwg.mxu0
    %v1159 = vlaneseq
    %v1160 = vshrl.u32 %v1159, 7
    %v1161 = vsub.s32 0, %v1160
    %v1162 = vrot.slane %v276, %v1161
    %v1163 = vlaneseq
    %v1164 = vshrl.u32 %v1163, 7
    %v1165 = vsub.s32 1, %v1164
    %v1166 = vrot.slane %v276, %v1165
    %v1169 = vadd.f32 %v1144, %v1162
    %v1170 = vadd.f32 %v1146, %v1166
    %v1171 = vadd.f32 %v1148, %v1162
    %v1172 = vadd.f32 %v1150, %v1166
    %v1173 = vmax.f32 %v1169, 0.0
    %v1174 = vmax.f32 %v1170, 0.0
    %v1175 = vmax.f32 %v1171, 0.0
    %v1176 = vmax.f32 %v1172, 0.0
    %v1177 = vpack.c.bf16 %v1173, %v1173
    %v1178 = vpack.c.bf16 %v1174, %v1174
    %v1211 = vunpack.c.l.b16 %v277
    %v1212 = vunpack.c.l.b16 %v278
    %v1213 = vunpack.c.l.b16 %v279
    %v1214 = vunpack.c.l.b16 %v280
    %v1215 = vunpack.c.l.b16 %v281
    %v1216 = vunpack.c.l.b16 %v282
    %v1217 = vunpack.c.l.b16 %v283
    %v1218 = vunpack.c.l.b16 %v284
    %v1219 = vunpack.c.l.b16 %v285
    %v1220 = vunpack.c.l.b16 %v286
    %v1221 = vunpack.c.l.b16 %v287
    %v1222 = vunpack.c.l.b16 %v288
    %v1223 = vunpack.c.l.b16 %v289
    %v1224 = vunpack.c.l.b16 %v290
    %v1225 = vunpack.c.l.b16 %v291
    %v1226 = vunpack.c.l.b16 %v292
    %v1227 = vunpack.c.l.b16 %v293
    %v1228 = vunpack.c.l.b16 %v294
    %v1229 = vunpack.c.l.b16 %v295
    %v1230 = vunpack.c.l.b16 %v296
    %v1231 = vunpack.c.l.b16 %v297
    %v1232 = vunpack.c.l.b16 %v298
    %v1233 = vunpack.c.l.b16 %v299
    %v1234 = vunpack.c.l.b16 %v300
    %v1235 = vunpack.c.l.b16 %v301
    %v1236 = vunpack.c.l.b16 %v302
    %v1237 = vunpack.c.l.b16 %v303
    %v1238 = vunpack.c.l.b16 %v304
    %v1239 = vunpack.c.l.b16 %v305
    %v1240 = vunpack.c.l.b16 %v306
    %v1241 = vunpack.c.l.b16 %v307
    %v1242 = vunpack.c.l.b16 %v308
    %v1243 = vpack.c.b16 %v1212, %v1211
    %v1244 = vpack.c.b16 %v1214, %v1213
    %v1245 = vpack.c.b16 %v1216, %v1215
    %v1246 = vpack.c.b16 %v1218, %v1217
    %v1247 = vpack.c.b16 %v1220, %v1219
    %v1248 = vpack.c.b16 %v1222, %v1221
    %v1249 = vpack.c.b16 %v1224, %v1223
    %v1250 = vpack.c.b16 %v1226, %v1225
    %v1251 = vpack.c.b16 %v1228, %v1227
    %v1252 = vpack.c.b16 %v1230, %v1229
    %v1253 = vpack.c.b16 %v1232, %v1231
    %v1254 = vpack.c.b16 %v1234, %v1233
    %v1255 = vpack.c.b16 %v1236, %v1235
    %v1256 = vpack.c.b16 %v1238, %v1237
    %v1257 = vpack.c.b16 %v1240, %v1239
    %v1258 = vpack.c.b16 %v1242, %v1241
    %1275 = vmatprep.subr.bf16.mxu0 0
    %1276 = vmatpush1.bf16.msra.mxu0 %v1250
    %1277 = vmatprep.subr.bf16.mxu0 0
    %1278 = vmatpush1.bf16.msra.mxu0 %v1249
    %1279 = vmatprep.subr.bf16.mxu0 0
    %1280 = vmatpush1.bf16.msra.mxu0 %v1248
    %1281 = vmatprep.subr.bf16.mxu0 0
    %1282 = vmatpush1.bf16.msra.mxu0 %v1247
    %1283 = vmatprep.subr.bf16.mxu0 0
    %1284 = vmatpush1.bf16.msra.mxu0 %v1246
    %1285 = vmatprep.subr.bf16.mxu0 0
    %1286 = vmatpush1.bf16.msra.mxu0 %v1245
    %1287 = vmatprep.subr.bf16.mxu0 0
    %1288 = vmatpush1.bf16.msra.mxu0 %v1244
    %1289 = vmatprep.subr.bf16.mxu0 0
    %1290 = vmatpush1.bf16.msra.mxu0 %v1243
    %1291 = vmatprep.subr.bf16.mxu0 0
    %1292 = vmatpush2.bf16.msra.mxu0 %v1258
    %1293 = vmatprep.subr.bf16.mxu0 0
    %1294 = vmatpush2.bf16.msra.mxu0 %v1257
    %1295 = vmatprep.subr.bf16.mxu0 0
    %1296 = vmatpush2.bf16.msra.mxu0 %v1256
    %1297 = vmatprep.subr.bf16.mxu0 0
    %1298 = vmatpush2.bf16.msra.mxu0 %v1255
    %1299 = vmatprep.subr.bf16.mxu0 0
    %1300 = vmatpush2.bf16.msra.mxu0 %v1254
    %1301 = vmatprep.subr.bf16.mxu0 0
    %1302 = vmatpush2.bf16.msra.mxu0 %v1253
    %1303 = vmatprep.subr.bf16.mxu0 0
    %1304 = vmatpush2.bf16.msra.mxu0 %v1252
    %1305 = vmatprep.subr.bf16.mxu0 0
    %1306 = vmatpush2.bf16.msra.mxu0 %v1251
    %1307 = vmatprep.mubr.bf16.mxu0 %v1178
    %1308 = vmatmul.mubr.bf16.gmra.mxu0 %v1177
    %v1309 = vpop.f32.mrf.mxu0
    %v1310 = vadd.f32 0.0, %v1309
    %v1311 = vpop.f32.mrf.mxu0
    %v1312 = vpop.f32.mrf.mxu0
    %v1313 = vpop.f32.mrf.mxu0
    %1314 = vdwg.mxu0
    %v1315 = vadd.f32 %v341, %v1310
    %v1316 = vpack.c.bf16 %v1175, %v1175
    %v1317 = vpack.c.bf16 %v1176, %v1176
    %v1350 = vunpack.c.l.b16 %v309
    %v1351 = vunpack.c.l.b16 %v310
    %v1352 = vunpack.c.l.b16 %v311
    %v1353 = vunpack.c.l.b16 %v312
    %v1354 = vunpack.c.l.b16 %v313
    %v1355 = vunpack.c.l.b16 %v314
    %v1356 = vunpack.c.l.b16 %v315
    %v1357 = vunpack.c.l.b16 %v316
    %v1358 = vunpack.c.l.b16 %v317
    %v1359 = vunpack.c.l.b16 %v318
    %v1360 = vunpack.c.l.b16 %v319
    %v1361 = vunpack.c.l.b16 %v320
    %v1362 = vunpack.c.l.b16 %v321
    %v1363 = vunpack.c.l.b16 %v322
    %v1364 = vunpack.c.l.b16 %v323
    %v1365 = vunpack.c.l.b16 %v324
    %v1366 = vunpack.c.l.b16 %v325
    %v1367 = vunpack.c.l.b16 %v326
    %v1368 = vunpack.c.l.b16 %v327
    %v1369 = vunpack.c.l.b16 %v328
    %v1370 = vunpack.c.l.b16 %v329
    %v1371 = vunpack.c.l.b16 %v330
    %v1372 = vunpack.c.l.b16 %v331
    %v1373 = vunpack.c.l.b16 %v332
    %v1374 = vunpack.c.l.b16 %v333
    %v1375 = vunpack.c.l.b16 %v334
    %v1376 = vunpack.c.l.b16 %v335
    %v1377 = vunpack.c.l.b16 %v336
    %v1378 = vunpack.c.l.b16 %v337
    %v1379 = vunpack.c.l.b16 %v338
    %v1380 = vunpack.c.l.b16 %v339
    %v1381 = vunpack.c.l.b16 %v340
    %v1382 = vpack.c.b16 %v1351, %v1350
    %v1383 = vpack.c.b16 %v1353, %v1352
    %v1384 = vpack.c.b16 %v1355, %v1354
    %v1385 = vpack.c.b16 %v1357, %v1356
    %v1386 = vpack.c.b16 %v1359, %v1358
    %v1387 = vpack.c.b16 %v1361, %v1360
    %v1388 = vpack.c.b16 %v1363, %v1362
    %v1389 = vpack.c.b16 %v1365, %v1364
    %v1390 = vpack.c.b16 %v1367, %v1366
    %v1391 = vpack.c.b16 %v1369, %v1368
    %v1392 = vpack.c.b16 %v1371, %v1370
    %v1393 = vpack.c.b16 %v1373, %v1372
    %v1394 = vpack.c.b16 %v1375, %v1374
    %v1395 = vpack.c.b16 %v1377, %v1376
    %v1396 = vpack.c.b16 %v1379, %v1378
    %v1397 = vpack.c.b16 %v1381, %v1380
    %1414 = vmatprep.subr.bf16.mxu0 0
    %1415 = vmatpush1.bf16.msra.mxu0 %v1389
    %1416 = vmatprep.subr.bf16.mxu0 0
    %1417 = vmatpush1.bf16.msra.mxu0 %v1388
    %1418 = vmatprep.subr.bf16.mxu0 0
    %1419 = vmatpush1.bf16.msra.mxu0 %v1387
    %1420 = vmatprep.subr.bf16.mxu0 0
    %1421 = vmatpush1.bf16.msra.mxu0 %v1386
    %1422 = vmatprep.subr.bf16.mxu0 0
    %1423 = vmatpush1.bf16.msra.mxu0 %v1385
    %1424 = vmatprep.subr.bf16.mxu0 0
    %1425 = vmatpush1.bf16.msra.mxu0 %v1384
    %1426 = vmatprep.subr.bf16.mxu0 0
    %1427 = vmatpush1.bf16.msra.mxu0 %v1383
    %1428 = vmatprep.subr.bf16.mxu0 0
    %1429 = vmatpush1.bf16.msra.mxu0 %v1382
    %1430 = vmatprep.subr.bf16.mxu0 0
    %1431 = vmatpush2.bf16.msra.mxu0 %v1397
    %1432 = vmatprep.subr.bf16.mxu0 0
    %1433 = vmatpush2.bf16.msra.mxu0 %v1396
    %1434 = vmatprep.subr.bf16.mxu0 0
    %1435 = vmatpush2.bf16.msra.mxu0 %v1395
    %1436 = vmatprep.subr.bf16.mxu0 0
    %1437 = vmatpush2.bf16.msra.mxu0 %v1394
    %1438 = vmatprep.subr.bf16.mxu0 0
    %1439 = vmatpush2.bf16.msra.mxu0 %v1393
    %1440 = vmatprep.subr.bf16.mxu0 0
    %1441 = vmatpush2.bf16.msra.mxu0 %v1392
    %1442 = vmatprep.subr.bf16.mxu0 0
    %1443 = vmatpush2.bf16.msra.mxu0 %v1391
    %1444 = vmatprep.subr.bf16.mxu0 0
    %1445 = vmatpush2.bf16.msra.mxu0 %v1390
    %1446 = vmatprep.mubr.bf16.mxu0 %v1317
    %1447 = vmatmul.mubr.bf16.gmra.mxu0 %v1316
    %v1448 = vpop.f32.mrf.mxu0
    %v1449 = vadd.f32 0.0, %v1448
    %v1450 = vpop.f32.mrf.mxu0
    %v1451 = vpop.f32.mrf.mxu0
    %v1452 = vpop.f32.mrf.mxu0
    %1453 = vdwg.mxu0
    %v1454 = vadd.f32 %v1315, %v1449
    %1455 = vst [vmem:[#allocation16] sm:$0x1] %v1454
    %s1456 = scalar_lea.vmem %s0, 24
    %v1457 = vld [vmem:[%s1456] sm:$0xff]
    %v1458 = vld [vmem:[%s1456 + $0x8] sm:$0xff]
    %v1459 = vld [vmem:[%s1456 + $0x10] sm:$0xff]
    %v1460 = vpack.c.bf16 %v1458, %v1457
    %v1461 = vpack.c.bf16 %v1459, %v1459
    %1462 = vmatprep.subr.bf16.mxu0 0
    %1463 = vmatpush1.bf16.msra.mxu0 %v392
    %1464 = vmatprep.subr.bf16.mxu0 0
    %1465 = vmatpush1.bf16.msra.mxu0 %v391
    %1466 = vmatprep.subr.bf16.mxu0 0
    %1467 = vmatpush1.bf16.msra.mxu0 %v390
    %1468 = vmatprep.subr.bf16.mxu0 0
    %1469 = vmatpush1.bf16.msra.mxu0 %v389
    %1470 = vmatprep.subr.bf16.mxu0 0
    %1471 = vmatpush1.bf16.msra.mxu0 %v388
    %1472 = vmatprep.subr.bf16.mxu0 0
    %1473 = vmatpush1.bf16.msra.mxu0 %v387
    %1474 = vmatprep.subr.bf16.mxu0 0
    %1475 = vmatpush1.bf16.msra.mxu0 %v386
    %1476 = vmatprep.subr.bf16.mxu0 0
    %1477 = vmatpush1.bf16.msra.mxu0 %v385
    %1478 = vmatprep.subr.bf16.mxu0 0
    %1479 = vmatpush2.bf16.msra.mxu0 0
    %1480 = vmatprep.subr.bf16.mxu0 0
    %1481 = vmatpush2.bf16.msra.mxu0 0
    %1482 = vmatprep.subr.bf16.mxu0 0
    %1483 = vmatpush2.bf16.msra.mxu0 0
    %1484 = vmatprep.subr.bf16.mxu0 0
    %1485 = vmatpush2.bf16.msra.mxu0 0
    %1486 = vmatprep.subr.bf16.mxu0 0
    %1487 = vmatpush2.bf16.msra.mxu0 0
    %1488 = vmatprep.subr.bf16.mxu0 0
    %1489 = vmatpush2.bf16.msra.mxu0 0
    %1490 = vmatprep.subr.bf16.mxu0 0
    %1491 = vmatpush2.bf16.msra.mxu0 0
    %1492 = vmatprep.subr.bf16.mxu0 0
    %1493 = vmatpush2.bf16.msra.mxu0 0
    %1494 = vmatprep.mubr.bf16.mxu0 0
    %1495 = vmatmul.mubr.bf16.gmra.mxu0 %v1460
    %v1496 = vpop.f32.mrf.mxu0
    %v1497 = vadd.f32 %v351, %v1496
    %v1498 = vpop.f32.mrf.mxu0
    %v1499 = vpop.f32.mrf.mxu0
    %v1500 = vadd.f32 %v351, %v1499
    %v1501 = vpop.f32.mrf.mxu0
    %1502 = vmatprep.mubr.bf16.mxu0 0
    %1503 = vmatmul.mubr.bf16.gmra.mxu0 %v1461
    %v1504 = vpop.f32.mrf.mxu0
    %v1505 = vadd.f32 %v351, %v1504
    %v1506 = vpop.f32.mrf.mxu0
    %v1507 = vpop.f32.mrf.mxu0
    %v1508 = vpop.f32.mrf.mxu0
    %1509 = vdwg.mxu0
    %v1510 = vmax.f32 %v1497, 0.0
    %v1511 = vmax.f32 %v1500, 0.0
    %v1512 = vmax.f32 %v1505, 0.0
    %v1513 = vpack.c.bf16 %v1511, %v1510
    %v1514 = vpack.c.bf16 %v1512, %v1512
    %v1516 = vshrl.u32 %v1513, 16
    %v1518 = vshll.u32 %v1513, 16
    %v1520 = vrot.slane %v1518, 1
    %v1521 = vor.u32 %v1516, %v1520
    %v1523 = vshll.u32 %v1514, 16
    %v1525 = vrot.slane %v1523, 1
    %v1526 = vsel %vm454, %v1521, %v1525
    %v1527 = vshrl.u32 %v1514, 16
    %v1529 = vor.u32 %v1527, %v1525
    %1532 = vmatprep.subr.bf16.mxu0 0
    %1533 = vmatpush1.bf16.msra.mxu0 %v511
    %1534 = vmatprep.subr.bf16.mxu0 0
    %1535 = vmatpush1.bf16.msra.mxu0 %v510
    %1536 = vmatprep.subr.bf16.mxu0 0
    %1537 = vmatpush1.bf16.msra.mxu0 %v509
    %1538 = vmatprep.subr.bf16.mxu0 0
    %1539 = vmatpush1.bf16.msra.mxu0 %v508
    %1540 = vmatprep.subr.bf16.mxu0 0
    %1541 = vmatpush1.bf16.msra.mxu0 %v507
    %1542 = vmatprep.subr.bf16.mxu0 0
    %1543 = vmatpush1.bf16.msra.mxu0 %v506
    %1544 = vmatprep.subr.bf16.mxu0 0
    %1545 = vmatpush1.bf16.msra.mxu0 %v505
    %1546 = vmatprep.subr.bf16.mxu0 0
    %1547 = vmatpush1.bf16.msra.mxu0 %v504
    %1548 = vmatprep.subr.bf16.mxu0 0
    %1549 = vmatpush2.bf16.msra.mxu0 0
    %1550 = vmatprep.subr.bf16.mxu0 0
    %1551 = vmatpush2.bf16.msra.mxu0 0
    %1552 = vmatprep.subr.bf16.mxu0 0
    %1553 = vmatpush2.bf16.msra.mxu0 0
    %1554 = vmatprep.subr.bf16.mxu0 0
    %1555 = vmatpush2.bf16.msra.mxu0 0
    %1556 = vmatprep.subr.bf16.mxu0 0
    %1557 = vmatpush2.bf16.msra.mxu0 0
    %1558 = vmatprep.subr.bf16.mxu0 0
    %1559 = vmatpush2.bf16.msra.mxu0 0
    %1560 = vmatprep.subr.bf16.mxu0 0
    %1561 = vmatpush2.bf16.msra.mxu0 0
    %1562 = vmatprep.subr.bf16.mxu0 0
    %1563 = vmatpush2.bf16.msra.mxu0 0
    %1564 = vmatprep.mubr.bf16.mxu0 0
    %1565 = vmatmul.mubr.bf16.gmra.mxu0 %v1526
    %v1566 = vpop.f32.mrf.mxu0
    %v1567 = vadd.f32 0.0, %v1566
    %v1568 = vpop.f32.mrf.mxu0
    %v1569 = vpop.f32.mrf.mxu0
    %v1570 = vadd.f32 0.0, %v1569
    %v1571 = vpop.f32.mrf.mxu0
    %1572 = vmatprep.mubr.bf16.mxu0 0
    %1573 = vmatmul.mubr.bf16.gmra.mxu0 %v1529
    %v1574 = vpop.f32.mrf.mxu0
    %v1575 = vadd.f32 0.0, %v1574
    %v1576 = vpop.f32.mrf.mxu0
    %v1577 = vpop.f32.mrf.mxu0
    %v1578 = vpop.f32.mrf.mxu0
    %1579 = vdwg.mxu0
    %1580 = vmatprep.subr.bf16.mxu0 0
    %1581 = vmatpush1.bf16.msra.mxu0 %v607
    %1582 = vmatprep.subr.bf16.mxu0 0
    %1583 = vmatpush1.bf16.msra.mxu0 %v606
    %1584 = vmatprep.subr.bf16.mxu0 0
    %1585 = vmatpush1.bf16.msra.mxu0 %v605
    %1586 = vmatprep.subr.bf16.mxu0 0
    %1587 = vmatpush1.bf16.msra.mxu0 %v604
    %1588 = vmatprep.subr.bf16.mxu0 0
    %1589 = vmatpush1.bf16.msra.mxu0 %v603
    %1590 = vmatprep.subr.bf16.mxu0 0
    %1591 = vmatpush1.bf16.msra.mxu0 %v602
    %1592 = vmatprep.subr.bf16.mxu0 0
    %1593 = vmatpush1.bf16.msra.mxu0 %v601
    %1594 = vmatprep.subr.bf16.mxu0 0
    %1595 = vmatpush1.bf16.msra.mxu0 %v600
    %1596 = vmatprep.subr.bf16.mxu0 0
    %1597 = vmatpush2.bf16.msra.mxu0 0
    %1598 = vmatprep.subr.bf16.mxu0 0
    %1599 = vmatpush2.bf16.msra.mxu0 0
    %1600 = vmatprep.subr.bf16.mxu0 0
    %1601 = vmatpush2.bf16.msra.mxu0 0
    %1602 = vmatprep.subr.bf16.mxu0 0
    %1603 = vmatpush2.bf16.msra.mxu0 0
    %1604 = vmatprep.subr.bf16.mxu0 0
    %1605 = vmatpush2.bf16.msra.mxu0 0
    %1606 = vmatprep.subr.bf16.mxu0 0
    %1607 = vmatpush2.bf16.msra.mxu0 0
    %1608 = vmatprep.subr.bf16.mxu0 0
    %1609 = vmatpush2.bf16.msra.mxu0 0
    %1610 = vmatprep.subr.bf16.mxu0 0
    %1611 = vmatpush2.bf16.msra.mxu0 0
    %1612 = vmatprep.mubr.bf16.mxu0 0
    %1613 = vmatmul.mubr.bf16.gmra.mxu0 %v1513
    %v1614 = vpop.f32.mrf.mxu0
    %v1615 = vadd.f32 %v1567, %v1614
    %v1616 = vpop.f32.mrf.mxu0
    %v1617 = vpop.f32.mrf.mxu0
    %v1618 = vadd.f32 %v1570, %v1617
    %v1619 = vpop.f32.mrf.mxu0
    %1620 = vmatprep.mubr.bf16.mxu0 0
    %1621 = vmatmul.mubr.bf16.gmra.mxu0 %v1514
    %v1622 = vpop.f32.mrf.mxu0
    %v1623 = vadd.f32 %v1575, %v1622
    %v1624 = vpop.f32.mrf.mxu0
    %v1625 = vpop.f32.mrf.mxu0
    %v1626 = vpop.f32.mrf.mxu0
    %1627 = vdwg.mxu0
    %v1628 = vadd.f32 %v1615, %v668
    %v1629 = vadd.f32 %v1618, %v668
    %v1630 = vadd.f32 %v1623, %v668
    %v1631 = vmax.f32 %v1628, 0.0
    %v1632 = vmax.f32 %v1629, 0.0
    %v1633 = vmax.f32 %v1630, 0.0
    %v1634 = vpack.c.bf16 %v1632, %v1631
    %v1635 = vpack.c.bf16 %v1633, %v1633
    %v1638 = vrot.slane %v1634, 1
    %v1639 = vrot.slane %v1635, 1
    %v1640 = vsel %vm680, %v1638, %v1639
    %1643 = vmatprep.subr.bf16.mxu0 0
    %1644 = vmatpush1.bf16.msra.mxu0 %v725
    %1645 = vmatprep.subr.bf16.mxu0 0
    %1646 = vmatpush1.bf16.msra.mxu0 %v724
    %1647 = vmatprep.subr.bf16.mxu0 0
    %1648 = vmatpush1.bf16.msra.mxu0 %v723
    %1649 = vmatprep.subr.bf16.mxu0 0
    %1650 = vmatpush1.bf16.msra.mxu0 %v722
    %1651 = vmatprep.subr.bf16.mxu0 0
    %1652 = vmatpush1.bf16.msra.mxu0 %v721
    %1653 = vmatprep.subr.bf16.mxu0 0
    %1654 = vmatpush1.bf16.msra.mxu0 %v720
    %1655 = vmatprep.subr.bf16.mxu0 0
    %1656 = vmatpush1.bf16.msra.mxu0 %v719
    %1657 = vmatprep.subr.bf16.mxu0 0
    %1658 = vmatpush1.bf16.msra.mxu0 %v718
    %1659 = vmatprep.subr.bf16.mxu0 0
    %1660 = vmatpush2.bf16.msra.mxu0 0
    %1661 = vmatprep.subr.bf16.mxu0 0
    %1662 = vmatpush2.bf16.msra.mxu0 0
    %1663 = vmatprep.subr.bf16.mxu0 0
    %1664 = vmatpush2.bf16.msra.mxu0 0
    %1665 = vmatprep.subr.bf16.mxu0 0
    %1666 = vmatpush2.bf16.msra.mxu0 0
    %1667 = vmatprep.subr.bf16.mxu0 0
    %1668 = vmatpush2.bf16.msra.mxu0 0
    %1669 = vmatprep.subr.bf16.mxu0 0
    %1670 = vmatpush2.bf16.msra.mxu0 0
    %1671 = vmatprep.subr.bf16.mxu0 0
    %1672 = vmatpush2.bf16.msra.mxu0 0
    %1673 = vmatprep.subr.bf16.mxu0 0
    %1674 = vmatpush2.bf16.msra.mxu0 0
    %1675 = vmatprep.mubr.bf16.mxu0 0
    %1676 = vmatmul.mubr.bf16.gmra.mxu0 %v1640
    %v1677 = vpop.f32.mrf.mxu0
    %v1678 = vadd.f32 0.0, %v1677
    %v1679 = vpop.f32.mrf.mxu0
    %v1680 = vpop.f32.mrf.mxu0
    %v1681 = vadd.f32 0.0, %v1680
    %v1682 = vpop.f32.mrf.mxu0
    %1683 = vmatprep.mubr.bf16.mxu0 0
    %1684 = vmatmul.mubr.bf16.gmra.mxu0 %v1639
    %v1685 = vpop.f32.mrf.mxu0
    %v1686 = vadd.f32 0.0, %v1685
    %v1687 = vpop.f32.mrf.mxu0
    %v1688 = vpop.f32.mrf.mxu0
    %v1689 = vpop.f32.mrf.mxu0
    %1690 = vdwg.mxu0
    %1691 = vmatprep.subr.bf16.mxu0 0
    %1692 = vmatpush1.bf16.msra.mxu0 %v821
    %1693 = vmatprep.subr.bf16.mxu0 0
    %1694 = vmatpush1.bf16.msra.mxu0 %v820
    %1695 = vmatprep.subr.bf16.mxu0 0
    %1696 = vmatpush1.bf16.msra.mxu0 %v819
    %1697 = vmatprep.subr.bf16.mxu0 0
    %1698 = vmatpush1.bf16.msra.mxu0 %v818
    %1699 = vmatprep.subr.bf16.mxu0 0
    %1700 = vmatpush1.bf16.msra.mxu0 %v817
    %1701 = vmatprep.subr.bf16.mxu0 0
    %1702 = vmatpush1.bf16.msra.mxu0 %v816
    %1703 = vmatprep.subr.bf16.mxu0 0
    %1704 = vmatpush1.bf16.msra.mxu0 %v815
    %1705 = vmatprep.subr.bf16.mxu0 0
    %1706 = vmatpush1.bf16.msra.mxu0 %v814
    %1707 = vmatprep.subr.bf16.mxu0 0
    %1708 = vmatpush2.bf16.msra.mxu0 0
    %1709 = vmatprep.subr.bf16.mxu0 0
    %1710 = vmatpush2.bf16.msra.mxu0 0
    %1711 = vmatprep.subr.bf16.mxu0 0
    %1712 = vmatpush2.bf16.msra.mxu0 0
    %1713 = vmatprep.subr.bf16.mxu0 0
    %1714 = vmatpush2.bf16.msra.mxu0 0
    %1715 = vmatprep.subr.bf16.mxu0 0
    %1716 = vmatpush2.bf16.msra.mxu0 0
    %1717 = vmatprep.subr.bf16.mxu0 0
    %1718 = vmatpush2.bf16.msra.mxu0 0
    %1719 = vmatprep.subr.bf16.mxu0 0
    %1720 = vmatpush2.bf16.msra.mxu0 0
    %1721 = vmatprep.subr.bf16.mxu0 0
    %1722 = vmatpush2.bf16.msra.mxu0 0
    %1723 = vmatprep.mubr.bf16.mxu0 0
    %1724 = vmatmul.mubr.bf16.gmra.mxu0 %v1634
    %v1725 = vpop.f32.mrf.mxu0
    %v1726 = vadd.f32 %v1678, %v1725
    %v1727 = vpop.f32.mrf.mxu0
    %v1728 = vpop.f32.mrf.mxu0
    %v1729 = vadd.f32 %v1681, %v1728
    %v1730 = vpop.f32.mrf.mxu0
    %1731 = vmatprep.mubr.bf16.mxu0 0
    %1732 = vmatmul.mubr.bf16.gmra.mxu0 %v1635
    %v1733 = vpop.f32.mrf.mxu0
    %v1734 = vadd.f32 %v1686, %v1733
    %v1735 = vpop.f32.mrf.mxu0
    %v1736 = vpop.f32.mrf.mxu0
    %v1737 = vpop.f32.mrf.mxu0
    %1738 = vdwg.mxu0
    %v1739 = vadd.f32 %v1726, %v882
    %v1740 = vadd.f32 %v1729, %v882
    %v1741 = vadd.f32 %v1734, %v882
    %v1742 = vmax.f32 %v1739, 0.0
    %v1743 = vmax.f32 %v1740, 0.0
    %v1744 = vmax.f32 %v1741, 0.0
    %v1745 = vpack.c.bf16 %v1743, %v1742
    %v1746 = vpack.c.bf16 %v1744, %v1744
    %v1749 = vrot.slane %v1745, 2
    %v1750 = vrot.slane %v1746, 2
    %v1751 = vsel %vm894, %v1749, %v1750
    %1754 = vmatprep.subr.bf16.mxu0 %v963
    %1755 = vmatpush1.bf16.msra.mxu0 %v962
    %1756 = vmatprep.subr.bf16.mxu0 %v961
    %1757 = vmatpush1.bf16.msra.mxu0 %v960
    %1758 = vmatprep.subr.bf16.mxu0 %v959
    %1759 = vmatpush1.bf16.msra.mxu0 %v958
    %1760 = vmatprep.subr.bf16.mxu0 %v957
    %1761 = vmatpush1.bf16.msra.mxu0 %v956
    %1762 = vmatprep.subr.bf16.mxu0 %v955
    %1763 = vmatpush1.bf16.msra.mxu0 %v954
    %1764 = vmatprep.subr.bf16.mxu0 %v953
    %1765 = vmatpush1.bf16.msra.mxu0 %v952
    %1766 = vmatprep.subr.bf16.mxu0 %v951
    %1767 = vmatpush1.bf16.msra.mxu0 %v950
    %1768 = vmatprep.subr.bf16.mxu0 %v949
    %1769 = vmatpush1.bf16.msra.mxu0 %v948
    %1770 = vmatprep.subr.bf16.mxu0 0
    %1771 = vmatpush2.bf16.msra.mxu0 0
    %1772 = vmatprep.subr.bf16.mxu0 0
    %1773 = vmatpush2.bf16.msra.mxu0 0
    %1774 = vmatprep.subr.bf16.mxu0 0
    %1775 = vmatpush2.bf16.msra.mxu0 0
    %1776 = vmatprep.subr.bf16.mxu0 0
    %1777 = vmatpush2.bf16.msra.mxu0 0
    %1778 = vmatprep.subr.bf16.mxu0 0
    %1779 = vmatpush2.bf16.msra.mxu0 0
    %1780 = vmatprep.subr.bf16.mxu0 0
    %1781 = vmatpush2.bf16.msra.mxu0 0
    %1782 = vmatprep.subr.bf16.mxu0 0
    %1783 = vmatpush2.bf16.msra.mxu0 0
    %1784 = vmatprep.subr.bf16.mxu0 0
    %1785 = vmatpush2.bf16.msra.mxu0 0
    %1786 = vmatprep.mubr.bf16.mxu0 0
    %1787 = vmatmul.mubr.bf16.gmra.mxu0 %v1751
    %v1788 = vpop.f32.mrf.mxu0
    %v1789 = vadd.f32 0.0, %v1788
    %v1790 = vpop.f32.mrf.mxu0
    %v1791 = vadd.f32 0.0, %v1790
    %v1792 = vpop.f32.mrf.mxu0
    %v1793 = vadd.f32 0.0, %v1792
    %v1794 = vpop.f32.mrf.mxu0
    %v1795 = vadd.f32 0.0, %v1794
    %1796 = vmatprep.mubr.bf16.mxu0 0
    %1797 = vmatmul.mubr.bf16.gmra.mxu0 %v1750
    %v1798 = vpop.f32.mrf.mxu0
    %v1799 = vpop.f32.mrf.mxu0
    %v1800 = vpop.f32.mrf.mxu0
    %v1801 = vpop.f32.mrf.mxu0
    %1802 = vdwg.mxu0
    %1803 = vmatprep.subr.bf16.mxu0 %v1092
    %1804 = vmatpush1.bf16.msra.mxu0 %v1091
    %1805 = vmatprep.subr.bf16.mxu0 %v1090
    %1806 = vmatpush1.bf16.msra.mxu0 %v1089
    %1807 = vmatprep.subr.bf16.mxu0 %v1088
    %1808 = vmatpush1.bf16.msra.mxu0 %v1087
    %1809 = vmatprep.subr.bf16.mxu0 %v1086
    %1810 = vmatpush1.bf16.msra.mxu0 %v1085
    %1811 = vmatprep.subr.bf16.mxu0 %v1084
    %1812 = vmatpush1.bf16.msra.mxu0 %v1083
    %1813 = vmatprep.subr.bf16.mxu0 %v1082
    %1814 = vmatpush1.bf16.msra.mxu0 %v1081
    %1815 = vmatprep.subr.bf16.mxu0 %v1080
    %1816 = vmatpush1.bf16.msra.mxu0 %v1079
    %1817 = vmatprep.subr.bf16.mxu0 %v1078
    %1818 = vmatpush1.bf16.msra.mxu0 %v1077
    %1819 = vmatprep.subr.bf16.mxu0 0
    %1820 = vmatpush2.bf16.msra.mxu0 0
    %1821 = vmatprep.subr.bf16.mxu0 0
    %1822 = vmatpush2.bf16.msra.mxu0 0
    %1823 = vmatprep.subr.bf16.mxu0 0
    %1824 = vmatpush2.bf16.msra.mxu0 0
    %1825 = vmatprep.subr.bf16.mxu0 0
    %1826 = vmatpush2.bf16.msra.mxu0 0
    %1827 = vmatprep.subr.bf16.mxu0 0
    %1828 = vmatpush2.bf16.msra.mxu0 0
    %1829 = vmatprep.subr.bf16.mxu0 0
    %1830 = vmatpush2.bf16.msra.mxu0 0
    %1831 = vmatprep.subr.bf16.mxu0 0
    %1832 = vmatpush2.bf16.msra.mxu0 0
    %1833 = vmatprep.subr.bf16.mxu0 0
    %1834 = vmatpush2.bf16.msra.mxu0 0
    %1835 = vmatprep.mubr.bf16.mxu0 0
    %1836 = vmatmul.mubr.bf16.gmra.mxu0 %v1745
    %v1837 = vpop.f32.mrf.mxu0
    %v1838 = vadd.f32 %v1789, %v1837
    %v1839 = vpop.f32.mrf.mxu0
    %v1840 = vadd.f32 %v1791, %v1839
    %v1841 = vpop.f32.mrf.mxu0
    %v1842 = vadd.f32 %v1793, %v1841
    %v1843 = vpop.f32.mrf.mxu0
    %v1844 = vadd.f32 %v1795, %v1843
    %1845 = vmatprep.mubr.bf16.mxu0 0
    %1846 = vmatmul.mubr.bf16.gmra.mxu0 %v1746
    %v1847 = vpop.f32.mrf.mxu0
    %v1848 = vpop.f32.mrf.mxu0
    %v1849 = vpop.f32.mrf.mxu0
    %v1850 = vpop.f32.mrf.mxu0
    %1851 = vdwg.mxu0
    %v1852 = vadd.f32 %v1838, %v1162
    %v1853 = vadd.f32 %v1840, %v1166
    %v1854 = vadd.f32 %v1842, %v1162
    %v1855 = vadd.f32 %v1844, %v1166
    %v1856 = vmax.f32 %v1852, 0.0
    %v1857 = vmax.f32 %v1853, 0.0
    %v1858 = vmax.f32 %v1854, 0.0
    %v1859 = vmax.f32 %v1855, 0.0
    %v1860 = vpack.c.bf16 %v1856, %v1856
    %v1861 = vpack.c.bf16 %v1857, %v1857
    %1862 = vmatprep.subr.bf16.mxu0 0
    %1863 = vmatpush1.bf16.msra.mxu0 %v1250
    %1864 = vmatprep.subr.bf16.mxu0 0
    %1865 = vmatpush1.bf16.msra.mxu0 %v1249
    %1866 = vmatprep.subr.bf16.mxu0 0
    %1867 = vmatpush1.bf16.msra.mxu0 %v1248
    %1868 = vmatprep.subr.bf16.mxu0 0
    %1869 = vmatpush1.bf16.msra.mxu0 %v1247
    %1870 = vmatprep.subr.bf16.mxu0 0
    %1871 = vmatpush1.bf16.msra.mxu0 %v1246
    %1872 = vmatprep.subr.bf16.mxu0 0
    %1873 = vmatpush1.bf16.msra.mxu0 %v1245
    %1874 = vmatprep.subr.bf16.mxu0 0
    %1875 = vmatpush1.bf16.msra.mxu0 %v1244
    %1876 = vmatprep.subr.bf16.mxu0 0
    %1877 = vmatpush1.bf16.msra.mxu0 %v1243
    %1878 = vmatprep.subr.bf16.mxu0 0
    %1879 = vmatpush2.bf16.msra.mxu0 %v1258
    %1880 = vmatprep.subr.bf16.mxu0 0
    %1881 = vmatpush2.bf16.msra.mxu0 %v1257
    %1882 = vmatprep.subr.bf16.mxu0 0
    %1883 = vmatpush2.bf16.msra.mxu0 %v1256
    %1884 = vmatprep.subr.bf16.mxu0 0
    %1885 = vmatpush2.bf16.msra.mxu0 %v1255
    %1886 = vmatprep.subr.bf16.mxu0 0
    %1887 = vmatpush2.bf16.msra.mxu0 %v1254
    %1888 = vmatprep.subr.bf16.mxu0 0
    %1889 = vmatpush2.bf16.msra.mxu0 %v1253
    %1890 = vmatprep.subr.bf16.mxu0 0
    %1891 = vmatpush2.bf16.msra.mxu0 %v1252
    %1892 = vmatprep.subr.bf16.mxu0 0
    %1893 = vmatpush2.bf16.msra.mxu0 %v1251
    %1894 = vmatprep.mubr.bf16.mxu0 %v1861
    %1895 = vmatmul.mubr.bf16.gmra.mxu0 %v1860
    %v1896 = vpop.f32.mrf.mxu0
    %v1897 = vadd.f32 0.0, %v1896
    %v1898 = vpop.f32.mrf.mxu0
    %v1899 = vpop.f32.mrf.mxu0
    %v1900 = vpop.f32.mrf.mxu0
    %1901 = vdwg.mxu0
    %v1902 = vadd.f32 %v341, %v1897
    %v1903 = vpack.c.bf16 %v1858, %v1858
    %v1904 = vpack.c.bf16 %v1859, %v1859
    %1905 = vmatprep.subr.bf16.mxu0 0
    %1906 = vmatpush1.bf16.msra.mxu0 %v1389
    %1907 = vmatprep.subr.bf16.mxu0 0
    %1908 = vmatpush1.bf16.msra.mxu0 %v1388
    %1909 = vmatprep.subr.bf16.mxu0 0
    %1910 = vmatpush1.bf16.msra.mxu0 %v1387
    %1911 = vmatprep.subr.bf16.mxu0 0
    %1912 = vmatpush1.bf16.msra.mxu0 %v1386
    %1913 = vmatprep.subr.bf16.mxu0 0
    %1914 = vmatpush1.bf16.msra.mxu0 %v1385
    %1915 = vmatprep.subr.bf16.mxu0 0
    %1916 = vmatpush1.bf16.msra.mxu0 %v1384
    %1917 = vmatprep.subr.bf16.mxu0 0
    %1918 = vmatpush1.bf16.msra.mxu0 %v1383
    %1919 = vmatprep.subr.bf16.mxu0 0
    %1920 = vmatpush1.bf16.msra.mxu0 %v1382
    %1921 = vmatprep.subr.bf16.mxu0 0
    %1922 = vmatpush2.bf16.msra.mxu0 %v1397
    %1923 = vmatprep.subr.bf16.mxu0 0
    %1924 = vmatpush2.bf16.msra.mxu0 %v1396
    %1925 = vmatprep.subr.bf16.mxu0 0
    %1926 = vmatpush2.bf16.msra.mxu0 %v1395
    %1927 = vmatprep.subr.bf16.mxu0 0
    %1928 = vmatpush2.bf16.msra.mxu0 %v1394
    %1929 = vmatprep.subr.bf16.mxu0 0
    %1930 = vmatpush2.bf16.msra.mxu0 %v1393
    %1931 = vmatprep.subr.bf16.mxu0 0
    %1932 = vmatpush2.bf16.msra.mxu0 %v1392
    %1933 = vmatprep.subr.bf16.mxu0 0
    %1934 = vmatpush2.bf16.msra.mxu0 %v1391
    %1935 = vmatprep.subr.bf16.mxu0 0
    %1936 = vmatpush2.bf16.msra.mxu0 %v1390
    %1937 = vmatprep.mubr.bf16.mxu0 %v1904
    %1938 = vmatmul.mubr.bf16.gmra.mxu0 %v1903
    %v1939 = vpop.f32.mrf.mxu0
    %v1940 = vadd.f32 0.0, %v1939
    %v1941 = vpop.f32.mrf.mxu0
    %v1942 = vpop.f32.mrf.mxu0
    %v1943 = vpop.f32.mrf.mxu0
    %1944 = vdwg.mxu0
    %v1945 = vadd.f32 %v1902, %v1940
    %1946 = vst [vmem:[#allocation16 + $0x1] sm:$0x1] %v1945
    // Predicated region
    $region94: #{mnist1d_convnet_forward.1} parent=1 // pred_check
      _
    $region95: #{mnist1d_convnet_forward.1} parent=1 // pred_check_branch
      %1948 = sbr.rel (0) target = $region97
    $region96: #{mnist1d_convnet_forward.1} parent=1 // pred_region
      %s1950 = ssub.s32 32, 32
      %1951 = vsyncadd [#allocation4], %s1950
      %s1953 = sshll.u32 [#allocation16], 4
      %s1954 = int_to_ptr.vmem [resolvable:$true] %s1953
      %1956 = dma.vmem_to_hbm [thread:$0]  %s1954, 32, %s15, [#allocation4]
    $region97: #{mnist1d_convnet_forward.1} parent=1 // pred_fallthru
      _
    // Predicated region
    $region98: #{mnist1d_convnet_forward.1} parent=1 // pred_check
      _
    $region99: #{mnist1d_convnet_forward.1} parent=1 // pred_check_branch
      %1958 = sbr.rel (0) target = $region101
    $region100: #{mnist1d_convnet_forward.1} parent=1 // pred_region
      %1959 = dma.done [#allocation4], 32
    $region101: #{mnist1d_convnet_forward.1} parent=1 // pred_fallthru
      _
    %1960 = vsyncpa [#allocation3], 1
    %1961 = vsyncpa [#allocation6], 1
    %1962 = vsyncpa [#allocation9], 1
    %1963 = vsyncpa [#allocation12], 1
    %1964 = vsyncpa [#allocation15], 1
    %1965 = vsyncpa [#allocation4], 1

</llo_original>
